<compile_context>
chip_gen: v7x
topology: tpu7x:2x2x1
jax: 0.10.0
libtpu: 0.0.40
codegen_flags: <defaults>
</compile_context>

<pallas_src>
import functools

import jax
import jax.numpy as jnp
from jax import lax
from jax.experimental import pallas as pl
from jax.experimental.pallas import tpu as pltpu

N_PAD = 128  # lane-dense padded width for the logits output


def _vmem():
    return pl.BlockSpec(memory_space=pltpu.MemorySpace.VMEM)


def _align8(n):
    return (n + 7) & ~7


# --------------------------- fused Pallas kernel ------------------------------

def _lpr_fused_kernel(patches1_ref, wslab_ref, out_ref,
                      *, B, W, P1, Cin, HID, offs):
    f32 = jnp.float32
    WB = W * B
    T = W + 1            # conv2 output width == RNN sequence length
    H2 = 2 * HID
    ws = wslab_ref

    def wsl(name, nrows, ncols):                 # static slice of the weight slab
        r0 = offs[name]
        return ws[r0:r0 + nrows, 0:ncols]

    # ---- conv1 (im2col matmul) + ReLU + (2,1) max-pool -----------------------
    # patches1 rows ordered (h-parity, pooled_h, w, b): the pool is a
    # contiguous half-vs-half max.
    y1 = jnp.dot(patches1_ref[...], wsl('w1', 9 * Cin, HID),
                 preferred_element_type=f32)
    y1 = jnp.maximum(y1 + wsl('b1', 1, HID), 0.0)
    half = P1 * WB
    p1 = jnp.maximum(y1[:half, :], y1[half:2 * half, :])     # rows (ph, w, b)
    p1h0 = p1[:WB, :]                                        # pooled row 0
    p1h1 = p1[WB:2 * WB, :]                                  # pooled row 1

    # ---- conv2 (k=2, pad=1) + ReLU + (2,1) max-pool as 6 tap matmuls ---------
    # Zero padding realized by the zero-block concats (no scratch, no scatter);
    # only the two conv2 rows that survive the pool (ho = 0, 1) are computed.
    zb = jnp.zeros((B, HID), f32)
    a_l = jnp.concatenate([zb, p1h0], axis=0)    # padded w = wo      (kw=0), h -> p1h0
    a_r = jnp.concatenate([p1h0, zb], axis=0)    # padded w = wo + 1  (kw=1), h -> p1h0
    b_l = jnp.concatenate([zb, p1h1], axis=0)    # same, h -> p1h1
    b_r = jnp.concatenate([p1h1, zb], axis=0)
    o2 = offs['w2']
    # taps ordered (kh, kw) = (0,0), (0,1), (1,0), (1,1); each (HID, HID)
    w2t = [ws[o2 + k * HID:o2 + (k + 1) * HID, 0:HID] for k in range(4)]
    b2 = wsl('b2', 1, HID)
    y_h0 = (jnp.dot(a_l, w2t[2], preferred_element_type=f32)
            + jnp.dot(a_r, w2t[3], preferred_element_type=f32) + b2)
    y_h1 = (jnp.dot(a_l, w2t[0], preferred_element_type=f32)
            + jnp.dot(a_r, w2t[1], preferred_element_type=f32)
            + jnp.dot(b_l, w2t[2], preferred_element_type=f32)
            + jnp.dot(b_r, w2t[3], preferred_element_type=f32) + b2)
    xs = jnp.maximum(jnp.maximum(y_h0, y_h1), 0.0)           # (T*B, HID) rows (t, b)

    # ---- bidirectional RNN ----------------------------------------------------
    # Input projection hoisted out of the recurrence (one matmul for all steps,
    # both directions); backward stream reversed with static slices.
    xproj = (jnp.dot(xs, wsl('wih', HID, H2), preferred_element_type=f32)
             + wsl('brnn_b', 1, H2))                          # (T*B, 2H)
    xpb_rev = jnp.concatenate(
        [xproj[(T - 1 - t) * B:(T - t) * B, HID:] for t in range(T)], axis=0)
    xm = jnp.concatenate([xproj[:, :HID], xpb_rev], axis=1)   # (T*B, 2H)

    whh = wsl('whh', H2, H2)                                  # block-diag (2H, 2H)
    h = jnp.zeros((B, H2), f32)
    # static full unroll (T is small) -> LLO scheduler sees every step
    # TODO(synk): hold whh MXU-stationary via pltpu.matmul_push_rhs/acc_lhs/pop.
    for t in range(T):
        h = jnp.tanh(xm[t * B:(t + 1) * B, :]
                     + jnp.dot(h, whh, preferred_element_type=f32))

    # ---- torch h_n.view(-1, 2H) quirk + final Linear: slices + ONE matmul ----
    def stack_row(i):      # row i of [h_fwd (B,H); h_bwd (B,H)]
        return h[i:i + 1, :HID] if i < B else h[i - B:i - B + 1, HID:]
    g = jnp.concatenate(
        [jnp.concatenate([stack_row(2 * r) for r in range(B)], axis=0),
         jnp.concatenate([stack_row(2 * r + 1) for r in range(B)], axis=0)],
        axis=1)                                               # (B, 2H)
    logits = (jnp.dot(g, wsl('wo', H2, N_PAD), preferred_element_type=f32)
              + wsl('bo', 1, N_PAD))                          # (B, 128) lane-dense
    out_ref[...] = logits.astype(out_ref.dtype)


# --------------------------- parameter preparation (hoisted) ------------------

def prepare_params(params, B, H, W):
    """Pre-reshape / pre-transpose all weights and pack them into ONE f32 slab."""
    f32 = jnp.float32
    HID = params['whh_f'].shape[0]
    Cin = params['w1'].shape[1]
    n_classes = params['wo'].shape[0]

    P1 = H // 2                      # pooled conv1 height
    H2O = P1 + 1                     # conv2 output height (k=2, pad=1)
    assert H2O // 2 == 1, 'the height of conv must be 1'
    assert P1 == 2                   # kernel's conv2 tap structure assumes pooled height 2

    # conv weights -> matmul form, rows ordered (kh, kw, cin)
    w1_mat = jnp.transpose(params['w1'], (2, 3, 1, 0)).reshape(9 * Cin, HID)
    w2_mat = jnp.transpose(params['w2'], (2, 3, 1, 0)).reshape(4 * HID, HID)
    b1 = params['b1'].reshape(1, HID)
    b2 = params['b2'].reshape(1, HID)

    # biRNN: fused input projection, summed biases, block-diagonal recurrent mat
    wih_fb = jnp.concatenate([params['wih_f'].T, params['wih_b'].T], axis=1)
    b_fb = jnp.concatenate([params['bih_f'] + params['bhh_f'],
                            params['bih_b'] + params['bhh_b']]).reshape(1, 2 * HID)
    zh = jnp.zeros((HID, HID), f32)
    whh_blk = jnp.concatenate(
        [jnp.concatenate([params['whh_f'].T, zh], axis=1),
         jnp.concatenate([zh, params['whh_b'].T], axis=1)], axis=0)

    # output Linear: [wo_a ; wo_b] stacked over the 2H contraction, lane-padded to 128
    wo_a = jnp.zeros((HID, N_PAD), f32).at[:, :n_classes].set(params['wo'][:, :HID].T)
    wo_b = jnp.zeros((HID, N_PAD), f32).at[:, :n_classes].set(params['wo'][:, HID:].T)
    wo_stk = jnp.concatenate([wo_a, wo_b], axis=0)
    bo = jnp.zeros((1, N_PAD), f32).at[:, :n_classes].set(params['bo'])

    # pack everything into ONE (rows, 128) f32 slab with 8-aligned row offsets
    sections = [('w1', w1_mat), ('b1', b1), ('w2', w2_mat), ('b2', b2),
                ('wih', wih_fb), ('brnn_b', b_fb), ('whh', whh_blk),
                ('wo', wo_stk), ('bo', bo)]
    offs, off = {}, 0
    for name, arr in sections:
        offs[name] = off
        off = _align8(off + arr.shape[0])
    wslab = jnp.zeros((off, N_PAD), f32)
    for name, arr in sections:
        r, c = arr.shape
        wslab = wslab.at[offs[name]:offs[name] + r, :c].set(arr.astype(f32))

    return dict(B=B, H=H, W=W, HID=HID, Cin=Cin, P1=P1, T=W + 1,
                n_classes=n_classes, offs=offs, wslab=wslab)


# --------------------------- forward wrapper ----------------------------------

def lpr_head_forward(x_nchw, kp):
    B, H, W = kp['B'], kp['H'], kp['W']
    HID, Cin, P1 = kp['HID'], kp['Cin'], kp['P1']

    # NCHW -> NHWC, pad, im2col for conv1 (one small XLA fusion under jit).
    # Rows ordered (parity, pooled_h, w, b) so both pools and the conv2 tap
    # assembly are contiguous-slice ops in-kernel.
    x = jnp.transpose(x_nchw, (0, 2, 3, 1))
    xp = jnp.pad(x, ((0, 0), (1, 1), (1, 1), (0, 0)))
    cols = [xp[:, i:i + H, j:j + W, :] for i in range(3) for j in range(3)]
    pat = jnp.stack(cols, axis=3).reshape(B, H, W, 9 * Cin)
    pat = pat[:, :2 * P1].reshape(B, P1, 2, W, 9 * Cin)
    patches1 = jnp.transpose(pat, (2, 1, 3, 0, 4)).reshape(2 * P1 * W * B, 9 * Cin)

    kernel = functools.partial(_lpr_fused_kernel, B=B, W=W, P1=P1, Cin=Cin,
                               HID=HID, offs=kp['offs'])
    out_pad = pl.pallas_call(
        kernel,
        out_shape=jax.ShapeDtypeStruct((B, N_PAD), jnp.float32),
        in_specs=[_vmem(), _vmem()],
        out_specs=_vmem(),
    )(patches1, kp['wslab'])
    return out_pad[:, :kp['n_classes']]


# --------------------------- pure-JAX reference --------------------------------

def reference_forward(x_nchw, params):
    x = jnp.transpose(x_nchw, (0, 2, 3, 1))

    def conv(x, w, b, pad):
        wh = jnp.transpose(w, (2, 3, 1, 0))           # OIHW -> HWIO
        y = lax.conv_general_dilated(
            x, wh, window_strides=(1, 1), padding=[(pad, pad), (pad, pad)],
            dimension_numbers=('NHWC', 'HWIO', 'NHWC'))
        return jnp.maximum(y + b, 0.0)

    def pool(y):
        Ho = y.shape[1] // 2
        return jnp.maximum(y[:, 0:2 * Ho:2], y[:, 1:2 * Ho:2])

    x = pool(conv(x, params['w1'], params['b1'], 1))
    x = pool(conv(x, params['w2'], params['b2'], 1))
    x_seq = jnp.transpose(x[:, 0, :, :], (1, 0, 2))   # (T, B, C)
    hsize = params['whh_f'].shape[0]
    B = x_seq.shape[1]

    def rnn_dir(xs, wih, whh, b):
        def step(h, x_t):
            return jnp.tanh(x_t @ wih.T + h @ whh.T + b), None
        hT, _ = lax.scan(step, jnp.zeros((B, hsize), jnp.float32), xs)
        return hT

    hf = rnn_dir(x_seq, params['wih_f'], params['whh_f'],
                 params['bih_f'] + params['bhh_f'])
    hb = rnn_dir(x_seq[::-1], params['wih_b'], params['whh_b'],
                 params['bih_b'] + params['bhh_b'])
    h = jnp.stack([hf, hb], axis=0).reshape(-1, 2 * hsize)
    return h @ params['wo'].T + params['bo']


# --------------------------- main ----------------------------------------------

if __name__ == "__main__":
    # H=4: conv(k3,p1)->4, pool->2, conv(k2,p1)->3, pool->1 (conv height becomes 1)
    # W=15: -> 15 -> 15 -> 16 -> 16  (sequence length T=16)
    B, Cin, H, W = 2, 4, 4, 15
    hidden, n_classes = 32, 37

    key = jax.random.PRNGKey(0)
    ks = jax.random.split(key, 13)

    def init(k, shape, scale=0.1):
        return scale * jax.random.normal(k, shape, dtype=jnp.float32)

    params = {
        'w1': init(ks[0], (hidden, Cin, 3, 3)),
        'b1': init(ks[1], (hidden,)),
        'w2': init(ks[2], (hidden, hidden, 2, 2)),
        'b2': init(ks[3], (hidden,)),
        'wih_f': init(ks[4], (hidden, hidden)),
        'whh_f': init(ks[5], (hidden, hidden)),
        'bih_f': init(ks[6], (hidden,)),
        'bhh_f': init(ks[7], (hidden,)),
        'wih_b': init(ks[8], (hidden, hidden)),
        'whh_b': init(ks[9], (hidden, hidden)),
        'bih_b': init(ks[10], (hidden,)),
        'bhh_b': init(ks[11], (hidden,)),
    }
    k_wo, k_bo, k_x = jax.random.split(ks[12], 3)
    params['wo'] = init(k_wo, (n_classes, 2 * hidden))
    params['bo'] = init(k_bo, (n_classes,))

    x = jax.random.normal(k_x, (B, Cin, H, W), dtype=jnp.float32)

    # weight prep hoisted out of the hot path; forward jitted so the im2col input
    # prep fuses with the single pallas_call launch.
    kp = prepare_params(params, B, H, W)
    forward = jax.jit(lambda xx: lpr_head_forward(xx, kp))

    out = jax.block_until_ready(forward(x))
    ref = jax.block_until_ready(reference_forward(x, params))

    assert out.shape == (B, n_classes), out.shape
    assert jnp.allclose(out, ref, rtol=1e-4, atol=1e-4), \
        float(jnp.max(jnp.abs(out - ref)))
    print("KERNEL_OK")
</pallas_src>

<mosaic_0001>
module attributes {stable_mosaic.version = 11 : i64} {
  func.func @_lpr_fused_kernel(%arg0: memref<120x36xf32, #tpu.memory_space<vmem>>, %arg1: memref<360x128xf32, #tpu.memory_space<vmem>>, %arg2: memref<2x128xf32, #tpu.memory_space<vmem>>) attributes {dimension_semantics = [], scalar_prefetch = 0 : i64, scratch_operands = 0 : i64, tpu.core_type = #tpu.core_type<tc>} {
    %c0 = arith.constant 0 : index
    %c0_0 = arith.constant 0 : index
    %0 = vector.load %arg0[%c0, %c0_0] : memref<120x36xf32, #tpu.memory_space<vmem>>, vector<120x36xf32>
    %c0_1 = arith.constant 0 : index
    %c0_2 = arith.constant 0 : index
    %1 = vector.load %arg1[%c0_1, %c0_2] : memref<360x128xf32, #tpu.memory_space<vmem>>, vector<36x32xf32>
    %cst = arith.constant dense<0.000000e+00> : vector<120x32xf32>
    %2 = tpu.matmul %0, %1, %cst {dimension_numbers = #tpu.dot_dimension_numbers<[1], [0], [0], [1], [0, 0, 1, 1], [], []>} : vector<120x36xf32>, vector<36x32xf32>, vector<120x32xf32> -> vector<120x32xf32>
    %c40 = arith.constant 40 : index
    %c0_3 = arith.constant 0 : index
    %3 = vector.load %arg1[%c40, %c0_3] : memref<360x128xf32, #tpu.memory_space<vmem>>, vector<1x32xf32>
    %4 = vector.broadcast %3 : vector<1x32xf32> to vector<120x32xf32>
    %5 = arith.addf %2, %4 : vector<120x32xf32>
    %cst_4 = arith.constant 0.000000e+00 : f32
    %6 = vector.broadcast %cst_4 : f32 to vector<120x32xf32>
    %7 = arith.maximumf %5, %6 : vector<120x32xf32>
    %8 = vector.extract_strided_slice %7 {offsets = [0, 0], sizes = [60, 32], strides = [1, 1]} : vector<120x32xf32> to vector<60x32xf32>
    %9 = vector.extract_strided_slice %7 {offsets = [60, 0], sizes = [60, 32], strides = [1, 1]} : vector<120x32xf32> to vector<60x32xf32>
    %10 = arith.maximumf %8, %9 : vector<60x32xf32>
    %11 = vector.extract_strided_slice %10 {offsets = [0, 0], sizes = [30, 32], strides = [1, 1]} : vector<60x32xf32> to vector<30x32xf32>
    %12 = vector.extract_strided_slice %10 {offsets = [30, 0], sizes = [30, 32], strides = [1, 1]} : vector<60x32xf32> to vector<30x32xf32>
    %cst_5 = arith.constant 0.000000e+00 : f32
    %13 = vector.broadcast %cst_5 : f32 to vector<2x32xf32>
    %14 = tpu.concatenate %13, %11 in 0 : vector<2x32xf32>, vector<30x32xf32> -> vector<32x32xf32>
    %15 = tpu.concatenate %11, %13 in 0 : vector<30x32xf32>, vector<2x32xf32> -> vector<32x32xf32>
    %16 = tpu.concatenate %13, %12 in 0 : vector<2x32xf32>, vector<30x32xf32> -> vector<32x32xf32>
    %17 = tpu.concatenate %12, %13 in 0 : vector<30x32xf32>, vector<2x32xf32> -> vector<32x32xf32>
    %c48 = arith.constant 48 : index
    %c0_6 = arith.constant 0 : index
    %18 = vector.load %arg1[%c48, %c0_6] : memref<360x128xf32, #tpu.memory_space<vmem>>, vector<32x32xf32>
    %c80 = arith.constant 80 : index
    %c0_7 = arith.constant 0 : index
    %19 = vector.load %arg1[%c80, %c0_7] : memref<360x128xf32, #tpu.memory_space<vmem>>, vector<32x32xf32>
    %c112 = arith.constant 112 : index
    %c0_8 = arith.constant 0 : index
    %20 = vector.load %arg1[%c112, %c0_8] : memref<360x128xf32, #tpu.memory_space<vmem>>, vector<32x32xf32>
    %c144 = arith.constant 144 : index
    %c0_9 = arith.constant 0 : index
    %21 = vector.load %arg1[%c144, %c0_9] : memref<360x128xf32, #tpu.memory_space<vmem>>, vector<32x32xf32>
    %c176 = arith.constant 176 : index
    %c0_10 = arith.constant 0 : index
    %22 = vector.load %arg1[%c176, %c0_10] : memref<360x128xf32, #tpu.memory_space<vmem>>, vector<1x32xf32>
    %cst_11 = arith.constant dense<0.000000e+00> : vector<32x32xf32>
    %23 = tpu.matmul %14, %20, %cst_11 {dimension_numbers = #tpu.dot_dimension_numbers<[1], [0], [0], [1], [0, 0, 1, 1], [], []>} : vector<32x32xf32>, vector<32x32xf32>, vector<32x32xf32> -> vector<32x32xf32>
    %cst_12 = arith.constant dense<0.000000e+00> : vector<32x32xf32>
    %24 = tpu.matmul %15, %21, %cst_12 {dimension_numbers = #tpu.dot_dimension_numbers<[1], [0], [0], [1], [0, 0, 1, 1], [], []>} : vector<32x32xf32>, vector<32x32xf32>, vector<32x32xf32> -> vector<32x32xf32>
    %25 = arith.addf %23, %24 : vector<32x32xf32>
    %26 = vector.broadcast %22 : vector<1x32xf32> to vector<32x32xf32>
    %27 = arith.addf %25, %26 : vector<32x32xf32>
    %cst_13 = arith.constant dense<0.000000e+00> : vector<32x32xf32>
    %28 = tpu.matmul %14, %18, %cst_13 {dimension_numbers = #tpu.dot_dimension_numbers<[1], [0], [0], [1], [0, 0, 1, 1], [], []>} : vector<32x32xf32>, vector<32x32xf32>, vector<32x32xf32> -> vector<32x32xf32>
    %cst_14 = arith.constant dense<0.000000e+00> : vector<32x32xf32>
    %29 = tpu.matmul %15, %19, %cst_14 {dimension_numbers = #tpu.dot_dimension_numbers<[1], [0], [0], [1], [0, 0, 1, 1], [], []>} : vector<32x32xf32>, vector<32x32xf32>, vector<32x32xf32> -> vector<32x32xf32>
    %30 = arith.addf %28, %29 : vector<32x32xf32>
    %cst_15 = arith.constant dense<0.000000e+00> : vector<32x32xf32>
    %31 = tpu.matmul %16, %20, %cst_15 {dimension_numbers = #tpu.dot_dimension_numbers<[1], [0], [0], [1], [0, 0, 1, 1], [], []>} : vector<32x32xf32>, vector<32x32xf32>, vector<32x32xf32> -> vector<32x32xf32>
    %32 = arith.addf %30, %31 : vector<32x32xf32>
    %cst_16 = arith.constant dense<0.000000e+00> : vector<32x32xf32>
    %33 = tpu.matmul %17, %21, %cst_16 {dimension_numbers = #tpu.dot_dimension_numbers<[1], [0], [0], [1], [0, 0, 1, 1], [], []>} : vector<32x32xf32>, vector<32x32xf32>, vector<32x32xf32> -> vector<32x32xf32>
    %34 = arith.addf %32, %33 : vector<32x32xf32>
    %35 = vector.broadcast %22 : vector<1x32xf32> to vector<32x32xf32>
    %36 = arith.addf %34, %35 : vector<32x32xf32>
    %37 = arith.maximumf %27, %36 : vector<32x32xf32>
    %cst_17 = arith.constant 0.000000e+00 : f32
    %38 = vector.broadcast %cst_17 : f32 to vector<32x32xf32>
    %39 = arith.maximumf %37, %38 : vector<32x32xf32>
    %c184 = arith.constant 184 : index
    %c0_18 = arith.constant 0 : index
    %40 = vector.load %arg1[%c184, %c0_18] : memref<360x128xf32, #tpu.memory_space<vmem>>, vector<32x64xf32>
    %cst_19 = arith.constant dense<0.000000e+00> : vector<32x64xf32>
    %41 = tpu.matmul %39, %40, %cst_19 {dimension_numbers = #tpu.dot_dimension_numbers<[1], [0], [0], [1], [0, 0, 1, 1], [], []>} : vector<32x32xf32>, vector<32x64xf32>, vector<32x64xf32> -> vector<32x64xf32>
    %c216 = arith.constant 216 : index
    %c0_20 = arith.constant 0 : index
    %42 = vector.load %arg1[%c216, %c0_20] : memref<360x128xf32, #tpu.memory_space<vmem>>, vector<1x64xf32>
    %43 = vector.broadcast %42 : vector<1x64xf32> to vector<32x64xf32>
    %44 = arith.addf %41, %43 : vector<32x64xf32>
    %45 = vector.extract_strided_slice %44 {offsets = [30, 32], sizes = [2, 32], strides = [1, 1]} : vector<32x64xf32> to vector<2x32xf32>
    %46 = vector.extract_strided_slice %44 {offsets = [28, 32], sizes = [2, 32], strides = [1, 1]} : vector<32x64xf32> to vector<2x32xf32>
    %47 = vector.extract_strided_slice %44 {offsets = [26, 32], sizes = [2, 32], strides = [1, 1]} : vector<32x64xf32> to vector<2x32xf32>
    %48 = vector.extract_strided_slice %44 {offsets = [24, 32], sizes = [2, 32], strides = [1, 1]} : vector<32x64xf32> to vector<2x32xf32>
    %49 = vector.extract_strided_slice %44 {offsets = [22, 32], sizes = [2, 32], strides = [1, 1]} : vector<32x64xf32> to vector<2x32xf32>
    %50 = vector.extract_strided_slice %44 {offsets = [20, 32], sizes = [2, 32], strides = [1, 1]} : vector<32x64xf32> to vector<2x32xf32>
    %51 = vector.extract_strided_slice %44 {offsets = [18, 32], sizes = [2, 32], strides = [1, 1]} : vector<32x64xf32> to vector<2x32xf32>
    %52 = vector.extract_strided_slice %44 {offsets = [16, 32], sizes = [2, 32], strides = [1, 1]} : vector<32x64xf32> to vector<2x32xf32>
    %53 = vector.extract_strided_slice %44 {offsets = [14, 32], sizes = [2, 32], strides = [1, 1]} : vector<32x64xf32> to vector<2x32xf32>
    %54 = vector.extract_strided_slice %44 {offsets = [12, 32], sizes = [2, 32], strides = [1, 1]} : vector<32x64xf32> to vector<2x32xf32>
    %55 = vector.extract_strided_slice %44 {offsets = [10, 32], sizes = [2, 32], strides = [1, 1]} : vector<32x64xf32> to vector<2x32xf32>
    %56 = vector.extract_strided_slice %44 {offsets = [8, 32], sizes = [2, 32], strides = [1, 1]} : vector<32x64xf32> to vector<2x32xf32>
    %57 = vector.extract_strided_slice %44 {offsets = [6, 32], sizes = [2, 32], strides = [1, 1]} : vector<32x64xf32> to vector<2x32xf32>
    %58 = vector.extract_strided_slice %44 {offsets = [4, 32], sizes = [2, 32], strides = [1, 1]} : vector<32x64xf32> to vector<2x32xf32>
    %59 = vector.extract_strided_slice %44 {offsets = [2, 32], sizes = [2, 32], strides = [1, 1]} : vector<32x64xf32> to vector<2x32xf32>
    %60 = vector.extract_strided_slice %44 {offsets = [0, 32], sizes = [2, 32], strides = [1, 1]} : vector<32x64xf32> to vector<2x32xf32>
    %61 = tpu.concatenate %45, %46, %47, %48, %49, %50, %51, %52, %53, %54, %55, %56, %57, %58, %59, %60 in 0 : vector<2x32xf32>, vector<2x32xf32>, vector<2x32xf32>, vector<2x32xf32>, vector<2x32xf32>, vector<2x32xf32>, vector<2x32xf32>, vector<2x32xf32>, vector<2x32xf32>, vector<2x32xf32>, vector<2x32xf32>, vector<2x32xf32>, vector<2x32xf32>, vector<2x32xf32>, vector<2x32xf32>, vector<2x32xf32> -> vector<32x32xf32>
    %62 = vector.extract_strided_slice %44 {offsets = [0, 0], sizes = [32, 32], strides = [1, 1]} : vector<32x64xf32> to vector<32x32xf32>
    %63 = tpu.concatenate %62, %61 in 1 : vector<32x32xf32>, vector<32x32xf32> -> vector<32x64xf32>
    %c224 = arith.constant 224 : index
    %c0_21 = arith.constant 0 : index
    %64 = vector.load %arg1[%c224, %c0_21] : memref<360x128xf32, #tpu.memory_space<vmem>>, vector<64x64xf32>
    %cst_22 = arith.constant 0.000000e+00 : f32
    %65 = vector.broadcast %cst_22 : f32 to vector<2x64xf32>
    %66 = vector.extract_strided_slice %63 {offsets = [0, 0], sizes = [2, 64], strides = [1, 1]} : vector<32x64xf32> to vector<2x64xf32>
    %cst_23 = arith.constant dense<0.000000e+00> : vector<2x64xf32>
    %67 = tpu.matmul %65, %64, %cst_23 {dimension_numbers = #tpu.dot_dimension_numbers<[1], [0], [0], [1], [0, 0, 1, 1], [], []>} : vector<2x64xf32>, vector<64x64xf32>, vector<2x64xf32> -> vector<2x64xf32>
    %68 = arith.addf %66, %67 : vector<2x64xf32>
    %69 = math.tanh %68 : vector<2x64xf32>
    %70 = vector.extract_strided_slice %63 {offsets = [2, 0], sizes = [2, 64], strides = [1, 1]} : vector<32x64xf32> to vector<2x64xf32>
    %cst_24 = arith.constant dense<0.000000e+00> : vector<2x64xf32>
    %71 = tpu.matmul %69, %64, %cst_24 {dimension_numbers = #tpu.dot_dimension_numbers<[1], [0], [0], [1], [0, 0, 1, 1], [], []>} : vector<2x64xf32>, vector<64x64xf32>, vector<2x64xf32> -> vector<2x64xf32>
    %72 = arith.addf %70, %71 : vector<2x64xf32>
    %73 = math.tanh %72 : vector<2x64xf32>
    %74 = vector.extract_strided_slice %63 {offsets = [4, 0], sizes = [2, 64], strides = [1, 1]} : vector<32x64xf32> to vector<2x64xf32>
    %cst_25 = arith.constant dense<0.000000e+00> : vector<2x64xf32>
    %75 = tpu.matmul %73, %64, %cst_25 {dimension_numbers = #tpu.dot_dimension_numbers<[1], [0], [0], [1], [0, 0, 1, 1], [], []>} : vector<2x64xf32>, vector<64x64xf32>, vector<2x64xf32> -> vector<2x64xf32>
    %76 = arith.addf %74, %75 : vector<2x64xf32>
    %77 = math.tanh %76 : vector<2x64xf32>
    %78 = vector.extract_strided_slice %63 {offsets = [6, 0], sizes = [2, 64], strides = [1, 1]} : vector<32x64xf32> to vector<2x64xf32>
    %cst_26 = arith.constant dense<0.000000e+00> : vector<2x64xf32>
    %79 = tpu.matmul %77, %64, %cst_26 {dimension_numbers = #tpu.dot_dimension_numbers<[1], [0], [0], [1], [0, 0, 1, 1], [], []>} : vector<2x64xf32>, vector<64x64xf32>, vector<2x64xf32> -> vector<2x64xf32>
    %80 = arith.addf %78, %79 : vector<2x64xf32>
    %81 = math.tanh %80 : vector<2x64xf32>
    %82 = vector.extract_strided_slice %63 {offsets = [8, 0], sizes = [2, 64], strides = [1, 1]} : vector<32x64xf32> to vector<2x64xf32>
    %cst_27 = arith.constant dense<0.000000e+00> : vector<2x64xf32>
    %83 = tpu.matmul %81, %64, %cst_27 {dimension_numbers = #tpu.dot_dimension_numbers<[1], [0], [0], [1], [0, 0, 1, 1], [], []>} : vector<2x64xf32>, vector<64x64xf32>, vector<2x64xf32> -> vector<2x64xf32>
    %84 = arith.addf %82, %83 : vector<2x64xf32>
    %85 = math.tanh %84 : vector<2x64xf32>
    %86 = vector.extract_strided_slice %63 {offsets = [10, 0], sizes = [2, 64], strides = [1, 1]} : vector<32x64xf32> to vector<2x64xf32>
    %cst_28 = arith.constant dense<0.000000e+00> : vector<2x64xf32>
    %87 = tpu.matmul %85, %64, %cst_28 {dimension_numbers = #tpu.dot_dimension_numbers<[1], [0], [0], [1], [0, 0, 1, 1], [], []>} : vector<2x64xf32>, vector<64x64xf32>, vector<2x64xf32> -> vector<2x64xf32>
    %88 = arith.addf %86, %87 : vector<2x64xf32>
    %89 = math.tanh %88 : vector<2x64xf32>
    %90 = vector.extract_strided_slice %63 {offsets = [12, 0], sizes = [2, 64], strides = [1, 1]} : vector<32x64xf32> to vector<2x64xf32>
    %cst_29 = arith.constant dense<0.000000e+00> : vector<2x64xf32>
    %91 = tpu.matmul %89, %64, %cst_29 {dimension_numbers = #tpu.dot_dimension_numbers<[1], [0], [0], [1], [0, 0, 1, 1], [], []>} : vector<2x64xf32>, vector<64x64xf32>, vector<2x64xf32> -> vector<2x64xf32>
    %92 = arith.addf %90, %91 : vector<2x64xf32>
    %93 = math.tanh %92 : vector<2x64xf32>
    %94 = vector.extract_strided_slice %63 {offsets = [14, 0], sizes = [2, 64], strides = [1, 1]} : vector<32x64xf32> to vector<2x64xf32>
    %cst_30 = arith.constant dense<0.000000e+00> : vector<2x64xf32>
    %95 = tpu.matmul %93, %64, %cst_30 {dimension_numbers = #tpu.dot_dimension_numbers<[1], [0], [0], [1], [0, 0, 1, 1], [], []>} : vector<2x64xf32>, vector<64x64xf32>, vector<2x64xf32> -> vector<2x64xf32>
    %96 = arith.addf %94, %95 : vector<2x64xf32>
    %97 = math.tanh %96 : vector<2x64xf32>
    %98 = vector.extract_strided_slice %63 {offsets = [16, 0], sizes = [2, 64], strides = [1, 1]} : vector<32x64xf32> to vector<2x64xf32>
    %cst_31 = arith.constant dense<0.000000e+00> : vector<2x64xf32>
    %99 = tpu.matmul %97, %64, %cst_31 {dimension_numbers = #tpu.dot_dimension_numbers<[1], [0], [0], [1], [0, 0, 1, 1], [], []>} : vector<2x64xf32>, vector<64x64xf32>, vector<2x64xf32> -> vector<2x64xf32>
    %100 = arith.addf %98, %99 : vector<2x64xf32>
    %101 = math.tanh %100 : vector<2x64xf32>
    %102 = vector.extract_strided_slice %63 {offsets = [18, 0], sizes = [2, 64], strides = [1, 1]} : vector<32x64xf32> to vector<2x64xf32>
    %cst_32 = arith.constant dense<0.000000e+00> : vector<2x64xf32>
    %103 = tpu.matmul %101, %64, %cst_32 {dimension_numbers = #tpu.dot_dimension_numbers<[1], [0], [0], [1], [0, 0, 1, 1], [], []>} : vector<2x64xf32>, vector<64x64xf32>, vector<2x64xf32> -> vector<2x64xf32>
    %104 = arith.addf %102, %103 : vector<2x64xf32>
    %105 = math.tanh %104 : vector<2x64xf32>
    %106 = vector.extract_strided_slice %63 {offsets = [20, 0], sizes = [2, 64], strides = [1, 1]} : vector<32x64xf32> to vector<2x64xf32>
    %cst_33 = arith.constant dense<0.000000e+00> : vector<2x64xf32>
    %107 = tpu.matmul %105, %64, %cst_33 {dimension_numbers = #tpu.dot_dimension_numbers<[1], [0], [0], [1], [0, 0, 1, 1], [], []>} : vector<2x64xf32>, vector<64x64xf32>, vector<2x64xf32> -> vector<2x64xf32>
    %108 = arith.addf %106, %107 : vector<2x64xf32>
    %109 = math.tanh %108 : vector<2x64xf32>
    %110 = vector.extract_strided_slice %63 {offsets = [22, 0], sizes = [2, 64], strides = [1, 1]} : vector<32x64xf32> to vector<2x64xf32>
    %cst_34 = arith.constant dense<0.000000e+00> : vector<2x64xf32>
    %111 = tpu.matmul %109, %64, %cst_34 {dimension_numbers = #tpu.dot_dimension_numbers<[1], [0], [0], [1], [0, 0, 1, 1], [], []>} : vector<2x64xf32>, vector<64x64xf32>, vector<2x64xf32> -> vector<2x64xf32>
    %112 = arith.addf %110, %111 : vector<2x64xf32>
    %113 = math.tanh %112 : vector<2x64xf32>
    %114 = vector.extract_strided_slice %63 {offsets = [24, 0], sizes = [2, 64], strides = [1, 1]} : vector<32x64xf32> to vector<2x64xf32>
    %cst_35 = arith.constant dense<0.000000e+00> : vector<2x64xf32>
    %115 = tpu.matmul %113, %64, %cst_35 {dimension_numbers = #tpu.dot_dimension_numbers<[1], [0], [0], [1], [0, 0, 1, 1], [], []>} : vector<2x64xf32>, vector<64x64xf32>, vector<2x64xf32> -> vector<2x64xf32>
    %116 = arith.addf %114, %115 : vector<2x64xf32>
    %117 = math.tanh %116 : vector<2x64xf32>
    %118 = vector.extract_strided_slice %63 {offsets = [26, 0], sizes = [2, 64], strides = [1, 1]} : vector<32x64xf32> to vector<2x64xf32>
    %cst_36 = arith.constant dense<0.000000e+00> : vector<2x64xf32>
    %119 = tpu.matmul %117, %64, %cst_36 {dimension_numbers = #tpu.dot_dimension_numbers<[1], [0], [0], [1], [0, 0, 1, 1], [], []>} : vector<2x64xf32>, vector<64x64xf32>, vector<2x64xf32> -> vector<2x64xf32>
    %120 = arith.addf %118, %119 : vector<2x64xf32>
    %121 = math.tanh %120 : vector<2x64xf32>
    %122 = vector.extract_strided_slice %63 {offsets = [28, 0], sizes = [2, 64], strides = [1, 1]} : vector<32x64xf32> to vector<2x64xf32>
    %cst_37 = arith.constant dense<0.000000e+00> : vector<2x64xf32>
    %123 = tpu.matmul %121, %64, %cst_37 {dimension_numbers = #tpu.dot_dimension_numbers<[1], [0], [0], [1], [0, 0, 1, 1], [], []>} : vector<2x64xf32>, vector<64x64xf32>, vector<2x64xf32> -> vector<2x64xf32>
    %124 = arith.addf %122, %123 : vector<2x64xf32>
    %125 = math.tanh %124 : vector<2x64xf32>
    %126 = vector.extract_strided_slice %63 {offsets = [30, 0], sizes = [2, 64], strides = [1, 1]} : vector<32x64xf32> to vector<2x64xf32>
    %cst_38 = arith.constant dense<0.000000e+00> : vector<2x64xf32>
    %127 = tpu.matmul %125, %64, %cst_38 {dimension_numbers = #tpu.dot_dimension_numbers<[1], [0], [0], [1], [0, 0, 1, 1], [], []>} : vector<2x64xf32>, vector<64x64xf32>, vector<2x64xf32> -> vector<2x64xf32>
    %128 = arith.addf %126, %127 : vector<2x64xf32>
    %129 = math.tanh %128 : vector<2x64xf32>
    %130 = vector.extract_strided_slice %129 {offsets = [0, 0], sizes = [1, 32], strides = [1, 1]} : vector<2x64xf32> to vector<1x32xf32>
    %131 = vector.extract_strided_slice %129 {offsets = [0, 32], sizes = [1, 32], strides = [1, 1]} : vector<2x64xf32> to vector<1x32xf32>
    %132 = tpu.concatenate %130, %131 in 0 : vector<1x32xf32>, vector<1x32xf32> -> vector<2x32xf32>
    %133 = vector.extract_strided_slice %129 {offsets = [1, 0], sizes = [1, 32], strides = [1, 1]} : vector<2x64xf32> to vector<1x32xf32>
    %134 = vector.extract_strided_slice %129 {offsets = [1, 32], sizes = [1, 32], strides = [1, 1]} : vector<2x64xf32> to vector<1x32xf32>
    %135 = tpu.concatenate %133, %134 in 0 : vector<1x32xf32>, vector<1x32xf32> -> vector<2x32xf32>
    %136 = tpu.concatenate %132, %135 in 1 : vector<2x32xf32>, vector<2x32xf32> -> vector<2x64xf32>
    %c288 = arith.constant 288 : index
    %c0_39 = arith.constant 0 : index
    %137 = vector.load %arg1[%c288, %c0_39] : memref<360x128xf32, #tpu.memory_space<vmem>>, vector<64x128xf32>
    %cst_40 = arith.constant dense<0.000000e+00> : vector<2x128xf32>
    %138 = tpu.matmul %136, %137, %cst_40 {dimension_numbers = #tpu.dot_dimension_numbers<[1], [0], [0], [1], [0, 0, 1, 1], [], []>} : vector<2x64xf32>, vector<64x128xf32>, vector<2x128xf32> -> vector<2x128xf32>
    %c352 = arith.constant 352 : index
    %c0_41 = arith.constant 0 : index
    %139 = vector.load %arg1[%c352, %c0_41] : memref<360x128xf32, #tpu.memory_space<vmem>>, vector<1x128xf32>
    %140 = vector.broadcast %139 : vector<1x128xf32> to vector<2x128xf32>
    %141 = arith.addf %138, %140 : vector<2x128xf32>
    %c0_42 = arith.constant 0 : index
    %c0_43 = arith.constant 0 : index
    %142 = vector.load %arg2[%c0_42, %c0_43] : memref<2x128xf32, #tpu.memory_space<vmem>>, vector<2x128xf32>
    tpu.vector_store %arg2[%c0_42, %c0_43], %141 {strides = array<i32>} : memref<2x128xf32, #tpu.memory_space<vmem>>, vector<2x128xf32>,
    return
  }
}

</mosaic_0001>

<llo_original>
// kernel: _lambda_.1
$region0: #{_lambda_.1}
  #allocation0 [shape = 'u32[]', space=smem, size = 0x4, offset = 0x4, fixed_abs, tag = 'smem constant byte address 0x4 - core index']
  #allocation1 [shape = 'u32[144,128]{1,0:T(1,128)}', space=vmem, size = 0x12000, scoped, tag = 'internal scratch']
  %s0 = inlined_call_operand.vmem [shape: f32[120,36], index: 0, kind: input, shape index: {}]
  %s1 = inlined_call_operand.vmem [shape: f32[360,128], index: 1, kind: input, shape index: {}]
  %s2 = inlined_call_operand.hbm [shape: f32[2,128], index: 2, kind: output, shape index: {}]
  %s3 = sld [smem:[#allocation0]]
  $region18: #{_lambda_.1} parent=0
    _
  %s5 = ssub.s32 1, %s3
  %s6 = scalar_select 0, %s5, %s3
  $region1: #{_lambda_.1} parent=0
    #allocation2 [shape = 'u8[1024]{0}', space=vmem, size = 0x400, scoped, tag = 'output window, operand 0, single buffered']
    #allocation3 [shape = 's32[1]{0}', space=sflag, size = 0x4, scoped, tag = 'scoped memory for _lambda_.1']
    %7 = vsyncpa [#allocation3], 0
    // Predicated region
    $region2: #{_lambda_.1} parent=1 // pred_check
      _
    $region3: #{_lambda_.1} parent=1 // pred_check_branch
      %9 = sbr.rel (0) target = $region5
    $region4: #{_lambda_.1} parent=1 // pred_region
      _
    $region5: #{_lambda_.1} parent=1 // pred_fallthru
      _
    // Predicated region
    $region6: #{_lambda_.1} parent=1 // pred_check
      _
    $region7: #{_lambda_.1} parent=1 // pred_check_branch
      %11 = sbr.rel (0) target = $region9
    $region8: #{_lambda_.1} parent=1 // pred_region
      _
    $region9: #{_lambda_.1} parent=1 // pred_fallthru
      _
    %v12 = vld [vmem:[%s0] sm:$0xff]
    %v13 = vld [vmem:[%s0 + $0x8] sm:$0xff]
    %v14 = vld [vmem:[%s0 + $0x10] sm:$0xff]
    %v15 = vld [vmem:[%s0 + $0x18] sm:$0xff]
    %v16 = vld [vmem:[%s0 + $0x20] sm:$0xff]
    %v17 = vld [vmem:[%s0 + $0x28] sm:$0xff]
    %v18 = vld [vmem:[%s0 + $0x30] sm:$0xff]
    %v19 = vld [vmem:[%s0 + $0x38] sm:$0xff]
    %v20 = vld [vmem:[%s0 + $0x40] sm:$0xff]
    %v21 = vld [vmem:[%s0 + $0x48] sm:$0xff]
    %v22 = vld [vmem:[%s0 + $0x50] sm:$0xff]
    %v23 = vld [vmem:[%s0 + $0x58] sm:$0xff]
    %v24 = vld [vmem:[%s0 + $0x60] sm:$0xff]
    %v25 = vld [vmem:[%s0 + $0x68] sm:$0xff]
    %v26 = vld [vmem:[%s0 + $0x70] sm:$0xff]
    %v27 = vld [vmem:[%s1] sm:$0xff]
    %v28 = vld [vmem:[%s1 + $0x8] sm:$0xff]
    %v29 = vld [vmem:[%s1 + $0x10] sm:$0xff]
    %v30 = vld [vmem:[%s1 + $0x18] sm:$0xff]
    %v31 = vld [vmem:[%s1 + $0x20] sm:$0xf]
    %v32 = vld [vmem:[%s1 + $0x28] sm:$0x1]
    %v33 = vlaneseq
    %v34 = vshrl.u32 %v33, 7
    %v35 = vsub.s32 0, %v34
    %v36 = vrot.slane %v32, %v35
    %vm37 = vcmask 293888
    %v39 = vsel %vm37, %v12, 0
    %v42 = vsel %vm37, %v13, 0
    %v45 = vsel %vm37, %v14, 0
    %v48 = vsel %vm37, %v15, 0
    %v51 = vsel %vm37, %v16, 0
    %v54 = vsel %vm37, %v17, 0
    %v57 = vsel %vm37, %v18, 0
    %v60 = vsel %vm37, %v19, 0
    %v63 = vsel %vm37, %v20, 0
    %v66 = vsel %vm37, %v21, 0
    %v69 = vsel %vm37, %v22, 0
    %v72 = vsel %vm37, %v23, 0
    %v75 = vsel %vm37, %v24, 0
    %v78 = vsel %vm37, %v25, 0
    %v81 = vsel %vm37, %v26, 0
    %vm83 = vcmask 1043456
    %v85 = vsel %vm83, %v31, 0
    %87 = vmatprep.subr.mxu0 0.0
    %88 = vmatpush1.msra.mxu0 %v27
    %89 = vmatprep.subr.mxu0 0.0
    %90 = vmatpush1.msra.mxu0 %v28
    %91 = vmatprep.subr.mxu0 0.0
    %92 = vmatpush1.msra.mxu0 %v29
    %93 = vmatprep.subr.mxu0 0.0
    %94 = vmatpush1.msra.mxu0 %v30
    %95 = vmatprep.subr.mxu0 0.0
    %96 = vmatpush1.msra.mxu0 %v85
    %97 = vmatprep.subr.mxu0 0.0
    %98 = vmatpush1.msra.mxu0 0.0
    %99 = vmatprep.subr.mxu0 0.0
    %100 = vmatpush1.msra.mxu0 0.0
    %101 = vmatprep.subr.mxu0 0.0
    %102 = vmatpush1.msra.mxu0 0.0
    %103 = vmatprep.subr.mxu0 0.0
    %104 = vmatpush1.msra.mxu0 0.0
    %105 = vmatprep.subr.mxu0 0.0
    %106 = vmatpush1.msra.mxu0 0.0
    %107 = vmatprep.subr.mxu0 0.0
    %108 = vmatpush1.msra.mxu0 0.0
    %109 = vmatprep.subr.mxu0 0.0
    %110 = vmatpush1.msra.mxu0 0.0
    %111 = vmatprep.subr.mxu0 0.0
    %112 = vmatpush1.msra.mxu0 0.0
    %113 = vmatprep.subr.mxu0 0.0
    %114 = vmatpush1.msra.mxu0 0.0
    %115 = vmatprep.subr.mxu0 0.0
    %116 = vmatpush1.msra.mxu0 0.0
    %117 = vmatprep.subr.mxu0 0.0
    %118 = vmatpush1.msra.mxu0 0.0
    %119 = vmatprep.subr.mxu0 0.0
    %120 = vmatpush1.msra.mxu0 0.0
    %121 = vmatprep.subr.mxu0 0.0
    %122 = vmatpush1.msra.mxu0 0.0
    %123 = vmatprep.subr.mxu0 0.0
    %124 = vmatpush1.msra.mxu0 0.0
    %125 = vmatprep.subr.mxu0 0.0
    %126 = vmatpush1.msra.mxu0 0.0
    %127 = vmatprep.subr.mxu0 0.0
    %128 = vmatpush1.msra.mxu0 0.0
    %129 = vmatprep.subr.mxu0 0.0
    %130 = vmatpush1.msra.mxu0 0.0
    %131 = vmatprep.subr.mxu0 0.0
    %132 = vmatpush1.msra.mxu0 0.0
    %133 = vmatprep.subr.mxu0 0.0
    %134 = vmatpush1.msra.mxu0 0.0
    %135 = vmatprep.subr.mxu0 0.0
    %136 = vmatpush1.msra.mxu0 0.0
    %137 = vmatprep.subr.mxu0 0.0
    %138 = vmatpush1.msra.mxu0 0.0
    %139 = vmatprep.subr.mxu0 0.0
    %140 = vmatpush1.msra.mxu0 0.0
    %141 = vmatprep.subr.mxu0 0.0
    %142 = vmatpush1.msra.mxu0 0.0
    %143 = vmatprep.subr.mxu0 0.0
    %144 = vmatpush1.msra.mxu0 0.0
    %145 = vmatprep.subr.mxu0 0.0
    %146 = vmatpush1.msra.mxu0 0.0
    %147 = vmatprep.subr.mxu0 0.0
    %148 = vmatpush1.msra.mxu0 0.0
    %149 = vmatprep.subr.mxu0 0.0
    %150 = vmatpush1.msra.mxu0 0.0
    %151 = vmatprep.mubr.f32.mxu0 0.0
    %152 = vmatmul.mubr.f32.gmra.mrb[0].mxu0 %v39
    %v153 = vpop.f32.mrb[0].mxu0
    %v154 = vadd.f32 %v36, %v153
    %v155 = vpop.f32.mrb[0].mxu0
    %156 = vmatprep.mubr.f32.mxu0 0.0
    %157 = vmatmul.mubr.f32.gmra.mrb[0].mxu0 %v42
    %v158 = vpop.f32.mrb[0].mxu0
    %v159 = vadd.f32 %v36, %v158
    %v160 = vpop.f32.mrb[0].mxu0
    %161 = vmatprep.mubr.f32.mxu0 0.0
    %162 = vmatmul.mubr.f32.gmra.mrb[0].mxu0 %v45
    %v163 = vpop.f32.mrb[0].mxu0
    %v164 = vadd.f32 %v36, %v163
    %v165 = vpop.f32.mrb[0].mxu0
    %166 = vmatprep.mubr.f32.mxu0 0.0
    %167 = vmatmul.mubr.f32.gmra.mrb[0].mxu0 %v48
    %v168 = vpop.f32.mrb[0].mxu0
    %v169 = vadd.f32 %v36, %v168
    %v170 = vpop.f32.mrb[0].mxu0
    %171 = vmatprep.mubr.f32.mxu0 0.0
    %172 = vmatmul.mubr.f32.gmra.mrb[0].mxu0 %v51
    %v173 = vpop.f32.mrb[0].mxu0
    %v174 = vadd.f32 %v36, %v173
    %v175 = vpop.f32.mrb[0].mxu0
    %176 = vmatprep.mubr.f32.mxu0 0.0
    %177 = vmatmul.mubr.f32.gmra.mrb[0].mxu0 %v54
    %v178 = vpop.f32.mrb[0].mxu0
    %v179 = vadd.f32 %v36, %v178
    %v180 = vpop.f32.mrb[0].mxu0
    %181 = vmatprep.mubr.f32.mxu0 0.0
    %182 = vmatmul.mubr.f32.gmra.mrb[0].mxu0 %v57
    %v183 = vpop.f32.mrb[0].mxu0
    %v184 = vadd.f32 %v36, %v183
    %v185 = vpop.f32.mrb[0].mxu0
    %186 = vmatprep.mubr.f32.mxu0 0.0
    %187 = vmatmul.mubr.f32.gmra.mrb[0].mxu0 %v60
    %v188 = vpop.f32.mrb[0].mxu0
    %v189 = vadd.f32 %v36, %v188
    %v190 = vpop.f32.mrb[0].mxu0
    %191 = vmatprep.mubr.f32.mxu0 0.0
    %192 = vmatmul.mubr.f32.gmra.mrb[0].mxu0 %v63
    %v193 = vpop.f32.mrb[0].mxu0
    %v194 = vadd.f32 %v36, %v193
    %v195 = vpop.f32.mrb[0].mxu0
    %196 = vmatprep.mubr.f32.mxu0 0.0
    %197 = vmatmul.mubr.f32.gmra.mrb[0].mxu0 %v66
    %v198 = vpop.f32.mrb[0].mxu0
    %v199 = vadd.f32 %v36, %v198
    %v200 = vpop.f32.mrb[0].mxu0
    %201 = vmatprep.mubr.f32.mxu0 0.0
    %202 = vmatmul.mubr.f32.gmra.mrb[0].mxu0 %v69
    %v203 = vpop.f32.mrb[0].mxu0
    %v204 = vadd.f32 %v36, %v203
    %v205 = vpop.f32.mrb[0].mxu0
    %206 = vmatprep.mubr.f32.mxu0 0.0
    %207 = vmatmul.mubr.f32.gmra.mrb[0].mxu0 %v72
    %v208 = vpop.f32.mrb[0].mxu0
    %v209 = vadd.f32 %v36, %v208
    %v210 = vpop.f32.mrb[0].mxu0
    %211 = vmatprep.mubr.f32.mxu0 0.0
    %212 = vmatmul.mubr.f32.gmra.mrb[0].mxu0 %v75
    %v213 = vpop.f32.mrb[0].mxu0
    %v214 = vadd.f32 %v36, %v213
    %v215 = vpop.f32.mrb[0].mxu0
    %216 = vmatprep.mubr.f32.mxu0 0.0
    %217 = vmatmul.mubr.f32.gmra.mrb[0].mxu0 %v78
    %v218 = vpop.f32.mrb[0].mxu0
    %v219 = vadd.f32 %v36, %v218
    %v220 = vpop.f32.mrb[0].mxu0
    %221 = vmatprep.mubr.f32.mxu0 0.0
    %222 = vmatmul.mubr.f32.gmra.mrb[0].mxu0 %v81
    %v223 = vpop.f32.mrb[0].mxu0
    %v224 = vadd.f32 %v36, %v223
    %v225 = vpop.f32.mrb[0].mxu0
    %226 = vdwg.mxu0
    %v227 = vmax.f32 %v154, 0.0
    %v228 = vmax.f32 %v159, 0.0
    %v229 = vmax.f32 %v164, 0.0
    %v230 = vmax.f32 %v169, 0.0
    %v231 = vmax.f32 %v174, 0.0
    %v232 = vmax.f32 %v179, 0.0
    %v233 = vmax.f32 %v184, 0.0
    %v234 = vmax.f32 %v189, 0.0
    %v235 = vmax.f32 %v194, 0.0
    %v236 = vmax.f32 %v199, 0.0
    %v237 = vmax.f32 %v204, 0.0
    %v238 = vmax.f32 %v209, 0.0
    %v239 = vmax.f32 %v214, 0.0
    %v240 = vmax.f32 %v219, 0.0
    %v241 = vmax.f32 %v224, 0.0
    %v250 = vrot.slane %v234, 4
    %v251 = vrot.slane %v235, 4
    %v252 = vsel %vm83, %v250, %v251
    %v253 = vrot.slane %v236, 4
    %v254 = vsel %vm83, %v251, %v253
    %v255 = vrot.slane %v237, 4
    %v256 = vsel %vm83, %v253, %v255
    %v257 = vrot.slane %v238, 4
    %v258 = vsel %vm83, %v255, %v257
    %v259 = vrot.slane %v239, 4
    %v260 = vsel %vm83, %v257, %v259
    %v261 = vrot.slane %v240, 4
    %v262 = vsel %vm83, %v259, %v261
    %v263 = vrot.slane %v241, 4
    %v264 = vsel %vm83, %v261, %v263
    %v273 = vmax.f32 %v227, %v252
    %v274 = vmax.f32 %v228, %v254
    %v275 = vmax.f32 %v229, %v256
    %v276 = vmax.f32 %v230, %v258
    %v277 = vmax.f32 %v231, %v260
    %v278 = vmax.f32 %v232, %v262
    %v279 = vmax.f32 %v233, %v264
    %v280 = vmax.f32 %v234, %v263
    %vm285 = vcmask 1041408
    %v286 = vrot.slane %v273, 6
    %v287 = vrot.slane %v274, 6
    %v288 = vsel %vm285, %v286, %v287
    %v289 = vrot.slane %v275, 6
    %v290 = vsel %vm285, %v287, %v289
    %v291 = vrot.slane %v276, 6
    %v292 = vsel %vm285, %v289, %v291
    %v294 = vsel %vm285, 0.0, %v286
    %vm295 = vcmask 1045504
    %v296 = vsel %vm295, %v276, 0.0
    %v301 = vrot.slane %v276, 4
    %v302 = vrot.slane %v277, 4
    %v303 = vsel %vm83, %v301, %v302
    %v304 = vrot.slane %v278, 4
    %v305 = vsel %vm83, %v302, %v304
    %v306 = vrot.slane %v279, 4
    %v307 = vsel %vm83, %v304, %v306
    %v308 = vrot.slane %v280, 4
    %v309 = vsel %vm83, %v306, %v308
    %v311 = vsel %vm285, 0.0, %v303
    %v312 = vrot.slane %v277, 6
    %v313 = vsel %vm285, %v291, %v312
    %v314 = vrot.slane %v278, 6
    %v315 = vsel %vm285, %v312, %v314
    %v316 = vrot.slane %v279, 6
    %v317 = vsel %vm285, %v314, %v316
    %v318 = vrot.slane %v280, 6
    %v319 = vsel %vm285, %v316, %v318
    %v321 = vsel %vm295, %v319, 0.0
    %v322 = vld [vmem:[%s1 + $0x30] sm:$0xff]
    %v323 = vld [vmem:[%s1 + $0x38] sm:$0xff]
    %v324 = vld [vmem:[%s1 + $0x40] sm:$0xff]
    %v325 = vld [vmem:[%s1 + $0x48] sm:$0xff]
    %v326 = vld [vmem:[%s1 + $0x50] sm:$0xff]
    %v327 = vld [vmem:[%s1 + $0x58] sm:$0xff]
    %v328 = vld [vmem:[%s1 + $0x60] sm:$0xff]
    %v329 = vld [vmem:[%s1 + $0x68] sm:$0xff]
    %v330 = vld [vmem:[%s1 + $0x70] sm:$0xff]
    %v331 = vld [vmem:[%s1 + $0x78] sm:$0xff]
    %v332 = vld [vmem:[%s1 + $0x80] sm:$0xff]
    %v333 = vld [vmem:[%s1 + $0x88] sm:$0xff]
    %v334 = vld [vmem:[%s1 + $0x90] sm:$0xff]
    %v335 = vld [vmem:[%s1 + $0x98] sm:$0xff]
    %v336 = vld [vmem:[%s1 + $0xa0] sm:$0xff]
    %v337 = vld [vmem:[%s1 + $0xa8] sm:$0xff]
    %v338 = vld [vmem:[%s1 + $0xb0] sm:$0x1]
    %vm339 = vcmask 261120
    %v340 = vsel %vm339, %v273, 0
    %v342 = vsel %vm339, %v274, 0
    %v344 = vsel %vm339, %v275, 0
    %v347 = vsel %vm339, %v296, 0
    %349 = vmatprep.subr.mxu0 0.0
    %350 = vmatpush1.msra.mxu0 %v334
    %351 = vmatprep.subr.mxu0 0.0
    %352 = vmatpush1.msra.mxu0 %v335
    %353 = vmatprep.subr.mxu0 0.0
    %354 = vmatpush1.msra.mxu0 %v336
    %355 = vmatprep.subr.mxu0 0.0
    %356 = vmatpush1.msra.mxu0 %v337
    %357 = vmatprep.subr.mxu0 0.0
    %358 = vmatpush1.msra.mxu0 0.0
    %359 = vmatprep.subr.mxu0 0.0
    %360 = vmatpush1.msra.mxu0 0.0
    %361 = vmatprep.subr.mxu0 0.0
    %362 = vmatpush1.msra.mxu0 0.0
    %363 = vmatprep.subr.mxu0 0.0
    %364 = vmatpush1.msra.mxu0 0.0
    %365 = vmatprep.subr.mxu0 0.0
    %366 = vmatpush1.msra.mxu0 0.0
    %367 = vmatprep.subr.mxu0 0.0
    %368 = vmatpush1.msra.mxu0 0.0
    %369 = vmatprep.subr.mxu0 0.0
    %370 = vmatpush1.msra.mxu0 0.0
    %371 = vmatprep.subr.mxu0 0.0
    %372 = vmatpush1.msra.mxu0 0.0
    %373 = vmatprep.subr.mxu0 0.0
    %374 = vmatpush1.msra.mxu0 0.0
    %375 = vmatprep.subr.mxu0 0.0
    %376 = vmatpush1.msra.mxu0 0.0
    %377 = vmatprep.subr.mxu0 0.0
    %378 = vmatpush1.msra.mxu0 0.0
    %379 = vmatprep.subr.mxu0 0.0
    %380 = vmatpush1.msra.mxu0 0.0
    %381 = vmatprep.subr.mxu0 0.0
    %382 = vmatpush1.msra.mxu0 0.0
    %383 = vmatprep.subr.mxu0 0.0
    %384 = vmatpush1.msra.mxu0 0.0
    %385 = vmatprep.subr.mxu0 0.0
    %386 = vmatpush1.msra.mxu0 0.0
    %387 = vmatprep.subr.mxu0 0.0
    %388 = vmatpush1.msra.mxu0 0.0
    %389 = vmatprep.subr.mxu0 0.0
    %390 = vmatpush1.msra.mxu0 0.0
    %391 = vmatprep.subr.mxu0 0.0
    %392 = vmatpush1.msra.mxu0 0.0
    %393 = vmatprep.subr.mxu0 0.0
    %394 = vmatpush1.msra.mxu0 0.0
    %395 = vmatprep.subr.mxu0 0.0
    %396 = vmatpush1.msra.mxu0 0.0
    %397 = vmatprep.subr.mxu0 0.0
    %398 = vmatpush1.msra.mxu0 0.0
    %399 = vmatprep.subr.mxu0 0.0
    %400 = vmatpush1.msra.mxu0 0.0
    %401 = vmatprep.subr.mxu0 0.0
    %402 = vmatpush1.msra.mxu0 0.0
    %403 = vmatprep.subr.mxu0 0.0
    %404 = vmatpush1.msra.mxu0 0.0
    %405 = vmatprep.subr.mxu0 0.0
    %406 = vmatpush1.msra.mxu0 0.0
    %407 = vmatprep.subr.mxu0 0.0
    %408 = vmatpush1.msra.mxu0 0.0
    %409 = vmatprep.subr.mxu0 0.0
    %410 = vmatpush1.msra.mxu0 0.0
    %411 = vmatprep.subr.mxu0 0.0
    %412 = vmatpush1.msra.mxu0 0.0
    %413 = vmatprep.mubr.f32.mxu0 0.0
    %414 = vmatmul.mubr.f32.gmra.mrb[0].mxu0 %v340
    %v415 = vpop.f32.mrb[0].mxu0
    %v416 = vadd.f32 0.0, %v415
    %v417 = vpop.f32.mrb[0].mxu0
    %418 = vmatprep.mubr.f32.mxu0 0.0
    %419 = vmatmul.mubr.f32.gmra.mrb[0].mxu0 %v342
    %v420 = vpop.f32.mrb[0].mxu0
    %v421 = vadd.f32 0.0, %v420
    %v422 = vpop.f32.mrb[0].mxu0
    %423 = vmatprep.mubr.f32.mxu0 0.0
    %424 = vmatmul.mubr.f32.gmra.mrb[0].mxu0 %v344
    %v425 = vpop.f32.mrb[0].mxu0
    %v426 = vadd.f32 0.0, %v425
    %v427 = vpop.f32.mrb[0].mxu0
    %428 = vmatprep.mubr.f32.mxu0 0.0
    %429 = vmatmul.mubr.f32.gmra.mrb[0].mxu0 %v347
    %v430 = vpop.f32.mrb[0].mxu0
    %v431 = vadd.f32 0.0, %v430
    %v432 = vpop.f32.mrb[0].mxu0
    %433 = vdwg.mxu0
    %v435 = vsel %vm339, %v294, 0
    %v437 = vsel %vm339, %v288, 0
    %v439 = vsel %vm339, %v290, 0
    %v441 = vsel %vm339, %v292, 0
    %443 = vmatprep.subr.mxu0 0.0
    %444 = vmatpush1.msra.mxu0 %v330
    %445 = vmatprep.subr.mxu0 0.0
    %446 = vmatpush1.msra.mxu0 %v331
    %447 = vmatprep.subr.mxu0 0.0
    %448 = vmatpush1.msra.mxu0 %v332
    %449 = vmatprep.subr.mxu0 0.0
    %450 = vmatpush1.msra.mxu0 %v333
    %451 = vmatprep.subr.mxu0 0.0
    %452 = vmatpush1.msra.mxu0 0.0
    %453 = vmatprep.subr.mxu0 0.0
    %454 = vmatpush1.msra.mxu0 0.0
    %455 = vmatprep.subr.mxu0 0.0
    %456 = vmatpush1.msra.mxu0 0.0
    %457 = vmatprep.subr.mxu0 0.0
    %458 = vmatpush1.msra.mxu0 0.0
    %459 = vmatprep.subr.mxu0 0.0
    %460 = vmatpush1.msra.mxu0 0.0
    %461 = vmatprep.subr.mxu0 0.0
    %462 = vmatpush1.msra.mxu0 0.0
    %463 = vmatprep.subr.mxu0 0.0
    %464 = vmatpush1.msra.mxu0 0.0
    %465 = vmatprep.subr.mxu0 0.0
    %466 = vmatpush1.msra.mxu0 0.0
    %467 = vmatprep.subr.mxu0 0.0
    %468 = vmatpush1.msra.mxu0 0.0
    %469 = vmatprep.subr.mxu0 0.0
    %470 = vmatpush1.msra.mxu0 0.0
    %471 = vmatprep.subr.mxu0 0.0
    %472 = vmatpush1.msra.mxu0 0.0
    %473 = vmatprep.subr.mxu0 0.0
    %474 = vmatpush1.msra.mxu0 0.0
    %475 = vmatprep.subr.mxu0 0.0
    %476 = vmatpush1.msra.mxu0 0.0
    %477 = vmatprep.subr.mxu0 0.0
    %478 = vmatpush1.msra.mxu0 0.0
    %479 = vmatprep.subr.mxu0 0.0
    %480 = vmatpush1.msra.mxu0 0.0
    %481 = vmatprep.subr.mxu0 0.0
    %482 = vmatpush1.msra.mxu0 0.0
    %483 = vmatprep.subr.mxu0 0.0
    %484 = vmatpush1.msra.mxu0 0.0
    %485 = vmatprep.subr.mxu0 0.0
    %486 = vmatpush1.msra.mxu0 0.0
    %487 = vmatprep.subr.mxu0 0.0
    %488 = vmatpush1.msra.mxu0 0.0
    %489 = vmatprep.subr.mxu0 0.0
    %490 = vmatpush1.msra.mxu0 0.0
    %491 = vmatprep.subr.mxu0 0.0
    %492 = vmatpush1.msra.mxu0 0.0
    %493 = vmatprep.subr.mxu0 0.0
    %494 = vmatpush1.msra.mxu0 0.0
    %495 = vmatprep.subr.mxu0 0.0
    %496 = vmatpush1.msra.mxu0 0.0
    %497 = vmatprep.subr.mxu0 0.0
    %498 = vmatpush1.msra.mxu0 0.0
    %499 = vmatprep.subr.mxu0 0.0
    %500 = vmatpush1.msra.mxu0 0.0
    %501 = vmatprep.subr.mxu0 0.0
    %502 = vmatpush1.msra.mxu0 0.0
    %503 = vmatprep.subr.mxu0 0.0
    %504 = vmatpush1.msra.mxu0 0.0
    %505 = vmatprep.subr.mxu0 0.0
    %506 = vmatpush1.msra.mxu0 0.0
    %507 = vmatprep.mubr.f32.mxu0 0.0
    %508 = vmatmul.mubr.f32.gmra.mrb[0].mxu0 %v435
    %v509 = vpop.f32.mrb[0].mxu0
    %v510 = vadd.f32 %v416, %v509
    %v511 = vpop.f32.mrb[0].mxu0
    %512 = vmatprep.mubr.f32.mxu0 0.0
    %513 = vmatmul.mubr.f32.gmra.mrb[0].mxu0 %v437
    %v514 = vpop.f32.mrb[0].mxu0
    %v515 = vadd.f32 %v421, %v514
    %v516 = vpop.f32.mrb[0].mxu0
    %517 = vmatprep.mubr.f32.mxu0 0.0
    %518 = vmatmul.mubr.f32.gmra.mrb[0].mxu0 %v439
    %v519 = vpop.f32.mrb[0].mxu0
    %v520 = vadd.f32 %v426, %v519
    %v521 = vpop.f32.mrb[0].mxu0
    %522 = vmatprep.mubr.f32.mxu0 0.0
    %523 = vmatmul.mubr.f32.gmra.mrb[0].mxu0 %v441
    %v524 = vpop.f32.mrb[0].mxu0
    %v525 = vadd.f32 %v431, %v524
    %v526 = vpop.f32.mrb[0].mxu0
    %527 = vdwg.mxu0
    %v528 = vlaneseq
    %v529 = vshrl.u32 %v528, 7
    %v530 = vsub.s32 0, %v529
    %v531 = vrot.slane %v338, %v530
    %v532 = vadd.f32 %v510, %v531
    %v533 = vadd.f32 %v515, %v531
    %v534 = vadd.f32 %v520, %v531
    %v535 = vadd.f32 %v525, %v531
    %536 = vmatprep.subr.mxu0 0.0
    %537 = vmatpush1.msra.mxu0 %v326
    %538 = vmatprep.subr.mxu0 0.0
    %539 = vmatpush1.msra.mxu0 %v327
    %540 = vmatprep.subr.mxu0 0.0
    %541 = vmatpush1.msra.mxu0 %v328
    %542 = vmatprep.subr.mxu0 0.0
    %543 = vmatpush1.msra.mxu0 %v329
    %544 = vmatprep.subr.mxu0 0.0
    %545 = vmatpush1.msra.mxu0 0.0
    %546 = vmatprep.subr.mxu0 0.0
    %547 = vmatpush1.msra.mxu0 0.0
    %548 = vmatprep.subr.mxu0 0.0
    %549 = vmatpush1.msra.mxu0 0.0
    %550 = vmatprep.subr.mxu0 0.0
    %551 = vmatpush1.msra.mxu0 0.0
    %552 = vmatprep.subr.mxu0 0.0
    %553 = vmatpush1.msra.mxu0 0.0
    %554 = vmatprep.subr.mxu0 0.0
    %555 = vmatpush1.msra.mxu0 0.0
    %556 = vmatprep.subr.mxu0 0.0
    %557 = vmatpush1.msra.mxu0 0.0
    %558 = vmatprep.subr.mxu0 0.0
    %559 = vmatpush1.msra.mxu0 0.0
    %560 = vmatprep.subr.mxu0 0.0
    %561 = vmatpush1.msra.mxu0 0.0
    %562 = vmatprep.subr.mxu0 0.0
    %563 = vmatpush1.msra.mxu0 0.0
    %564 = vmatprep.subr.mxu0 0.0
    %565 = vmatpush1.msra.mxu0 0.0
    %566 = vmatprep.subr.mxu0 0.0
    %567 = vmatpush1.msra.mxu0 0.0
    %568 = vmatprep.subr.mxu0 0.0
    %569 = vmatpush1.msra.mxu0 0.0
    %570 = vmatprep.subr.mxu0 0.0
    %571 = vmatpush1.msra.mxu0 0.0
    %572 = vmatprep.subr.mxu0 0.0
    %573 = vmatpush1.msra.mxu0 0.0
    %574 = vmatprep.subr.mxu0 0.0
    %575 = vmatpush1.msra.mxu0 0.0
    %576 = vmatprep.subr.mxu0 0.0
    %577 = vmatpush1.msra.mxu0 0.0
    %578 = vmatprep.subr.mxu0 0.0
    %579 = vmatpush1.msra.mxu0 0.0
    %580 = vmatprep.subr.mxu0 0.0
    %581 = vmatpush1.msra.mxu0 0.0
    %582 = vmatprep.subr.mxu0 0.0
    %583 = vmatpush1.msra.mxu0 0.0
    %584 = vmatprep.subr.mxu0 0.0
    %585 = vmatpush1.msra.mxu0 0.0
    %586 = vmatprep.subr.mxu0 0.0
    %587 = vmatpush1.msra.mxu0 0.0
    %588 = vmatprep.subr.mxu0 0.0
    %589 = vmatpush1.msra.mxu0 0.0
    %590 = vmatprep.subr.mxu0 0.0
    %591 = vmatpush1.msra.mxu0 0.0
    %592 = vmatprep.subr.mxu0 0.0
    %593 = vmatpush1.msra.mxu0 0.0
    %594 = vmatprep.subr.mxu0 0.0
    %595 = vmatpush1.msra.mxu0 0.0
    %596 = vmatprep.subr.mxu0 0.0
    %597 = vmatpush1.msra.mxu0 0.0
    %598 = vmatprep.subr.mxu0 0.0
    %599 = vmatpush1.msra.mxu0 0.0
    %600 = vmatprep.mubr.f32.mxu0 0.0
    %601 = vmatmul.mubr.f32.gmra.mrb[0].mxu0 %v340
    %v602 = vpop.f32.mrb[0].mxu0
    %v603 = vadd.f32 0.0, %v602
    %v604 = vpop.f32.mrb[0].mxu0
    %605 = vmatprep.mubr.f32.mxu0 0.0
    %606 = vmatmul.mubr.f32.gmra.mrb[0].mxu0 %v342
    %v607 = vpop.f32.mrb[0].mxu0
    %v608 = vadd.f32 0.0, %v607
    %v609 = vpop.f32.mrb[0].mxu0
    %610 = vmatprep.mubr.f32.mxu0 0.0
    %611 = vmatmul.mubr.f32.gmra.mrb[0].mxu0 %v344
    %v612 = vpop.f32.mrb[0].mxu0
    %v613 = vadd.f32 0.0, %v612
    %v614 = vpop.f32.mrb[0].mxu0
    %615 = vmatprep.mubr.f32.mxu0 0.0
    %616 = vmatmul.mubr.f32.gmra.mrb[0].mxu0 %v347
    %v617 = vpop.f32.mrb[0].mxu0
    %v618 = vadd.f32 0.0, %v617
    %v619 = vpop.f32.mrb[0].mxu0
    %620 = vdwg.mxu0
    %621 = vmatprep.subr.mxu0 0.0
    %622 = vmatpush1.msra.mxu0 %v322
    %623 = vmatprep.subr.mxu0 0.0
    %624 = vmatpush1.msra.mxu0 %v323
    %625 = vmatprep.subr.mxu0 0.0
    %626 = vmatpush1.msra.mxu0 %v324
    %627 = vmatprep.subr.mxu0 0.0
    %628 = vmatpush1.msra.mxu0 %v325
    %629 = vmatprep.subr.mxu0 0.0
    %630 = vmatpush1.msra.mxu0 0.0
    %631 = vmatprep.subr.mxu0 0.0
    %632 = vmatpush1.msra.mxu0 0.0
    %633 = vmatprep.subr.mxu0 0.0
    %634 = vmatpush1.msra.mxu0 0.0
    %635 = vmatprep.subr.mxu0 0.0
    %636 = vmatpush1.msra.mxu0 0.0
    %637 = vmatprep.subr.mxu0 0.0
    %638 = vmatpush1.msra.mxu0 0.0
    %639 = vmatprep.subr.mxu0 0.0
    %640 = vmatpush1.msra.mxu0 0.0
    %641 = vmatprep.subr.mxu0 0.0
    %642 = vmatpush1.msra.mxu0 0.0
    %643 = vmatprep.subr.mxu0 0.0
    %644 = vmatpush1.msra.mxu0 0.0
    %645 = vmatprep.subr.mxu0 0.0
    %646 = vmatpush1.msra.mxu0 0.0
    %647 = vmatprep.subr.mxu0 0.0
    %648 = vmatpush1.msra.mxu0 0.0
    %649 = vmatprep.subr.mxu0 0.0
    %650 = vmatpush1.msra.mxu0 0.0
    %651 = vmatprep.subr.mxu0 0.0
    %652 = vmatpush1.msra.mxu0 0.0
    %653 = vmatprep.subr.mxu0 0.0
    %654 = vmatpush1.msra.mxu0 0.0
    %655 = vmatprep.subr.mxu0 0.0
    %656 = vmatpush1.msra.mxu0 0.0
    %657 = vmatprep.subr.mxu0 0.0
    %658 = vmatpush1.msra.mxu0 0.0
    %659 = vmatprep.subr.mxu0 0.0
    %660 = vmatpush1.msra.mxu0 0.0
    %661 = vmatprep.subr.mxu0 0.0
    %662 = vmatpush1.msra.mxu0 0.0
    %663 = vmatprep.subr.mxu0 0.0
    %664 = vmatpush1.msra.mxu0 0.0
    %665 = vmatprep.subr.mxu0 0.0
    %666 = vmatpush1.msra.mxu0 0.0
    %667 = vmatprep.subr.mxu0 0.0
    %668 = vmatpush1.msra.mxu0 0.0
    %669 = vmatprep.subr.mxu0 0.0
    %670 = vmatpush1.msra.mxu0 0.0
    %671 = vmatprep.subr.mxu0 0.0
    %672 = vmatpush1.msra.mxu0 0.0
    %673 = vmatprep.subr.mxu0 0.0
    %674 = vmatpush1.msra.mxu0 0.0
    %675 = vmatprep.subr.mxu0 0.0
    %676 = vmatpush1.msra.mxu0 0.0
    %677 = vmatprep.subr.mxu0 0.0
    %678 = vmatpush1.msra.mxu0 0.0
    %679 = vmatprep.subr.mxu0 0.0
    %680 = vmatpush1.msra.mxu0 0.0
    %681 = vmatprep.subr.mxu0 0.0
    %682 = vmatpush1.msra.mxu0 0.0
    %683 = vmatprep.subr.mxu0 0.0
    %684 = vmatpush1.msra.mxu0 0.0
    %685 = vmatprep.mubr.f32.mxu0 0.0
    %686 = vmatmul.mubr.f32.gmra.mrb[0].mxu0 %v435
    %v687 = vpop.f32.mrb[0].mxu0
    %v688 = vadd.f32 %v603, %v687
    %v689 = vpop.f32.mrb[0].mxu0
    %690 = vmatprep.mubr.f32.mxu0 0.0
    %691 = vmatmul.mubr.f32.gmra.mrb[0].mxu0 %v437
    %v692 = vpop.f32.mrb[0].mxu0
    %v693 = vadd.f32 %v608, %v692
    %v694 = vpop.f32.mrb[0].mxu0
    %695 = vmatprep.mubr.f32.mxu0 0.0
    %696 = vmatmul.mubr.f32.gmra.mrb[0].mxu0 %v439
    %v697 = vpop.f32.mrb[0].mxu0
    %v698 = vadd.f32 %v613, %v697
    %v699 = vpop.f32.mrb[0].mxu0
    %700 = vmatprep.mubr.f32.mxu0 0.0
    %701 = vmatmul.mubr.f32.gmra.mrb[0].mxu0 %v441
    %v702 = vpop.f32.mrb[0].mxu0
    %v703 = vadd.f32 %v618, %v702
    %v704 = vpop.f32.mrb[0].mxu0
    %705 = vdwg.mxu0
    %v707 = vsel %vm339, %v311, 0
    %v709 = vsel %vm339, %v305, 0
    %v711 = vsel %vm339, %v307, 0
    %v713 = vsel %vm339, %v309, 0
    %715 = vmatprep.subr.mxu0 0.0
    %716 = vmatpush1.msra.mxu0 %v330
    %717 = vmatprep.subr.mxu0 0.0
    %718 = vmatpush1.msra.mxu0 %v331
    %719 = vmatprep.subr.mxu0 0.0
    %720 = vmatpush1.msra.mxu0 %v332
    %721 = vmatprep.subr.mxu0 0.0
    %722 = vmatpush1.msra.mxu0 %v333
    %723 = vmatprep.subr.mxu0 0.0
    %724 = vmatpush1.msra.mxu0 0.0
    %725 = vmatprep.subr.mxu0 0.0
    %726 = vmatpush1.msra.mxu0 0.0
    %727 = vmatprep.subr.mxu0 0.0
    %728 = vmatpush1.msra.mxu0 0.0
    %729 = vmatprep.subr.mxu0 0.0
    %730 = vmatpush1.msra.mxu0 0.0
    %731 = vmatprep.subr.mxu0 0.0
    %732 = vmatpush1.msra.mxu0 0.0
    %733 = vmatprep.subr.mxu0 0.0
    %734 = vmatpush1.msra.mxu0 0.0
    %735 = vmatprep.subr.mxu0 0.0
    %736 = vmatpush1.msra.mxu0 0.0
    %737 = vmatprep.subr.mxu0 0.0
    %738 = vmatpush1.msra.mxu0 0.0
    %739 = vmatprep.subr.mxu0 0.0
    %740 = vmatpush1.msra.mxu0 0.0
    %741 = vmatprep.subr.mxu0 0.0
    %742 = vmatpush1.msra.mxu0 0.0
    %743 = vmatprep.subr.mxu0 0.0
    %744 = vmatpush1.msra.mxu0 0.0
    %745 = vmatprep.subr.mxu0 0.0
    %746 = vmatpush1.msra.mxu0 0.0
    %747 = vmatprep.subr.mxu0 0.0
    %748 = vmatpush1.msra.mxu0 0.0
    %749 = vmatprep.subr.mxu0 0.0
    %750 = vmatpush1.msra.mxu0 0.0
    %751 = vmatprep.subr.mxu0 0.0
    %752 = vmatpush1.msra.mxu0 0.0
    %753 = vmatprep.subr.mxu0 0.0
    %754 = vmatpush1.msra.mxu0 0.0
    %755 = vmatprep.subr.mxu0 0.0
    %756 = vmatpush1.msra.mxu0 0.0
    %757 = vmatprep.subr.mxu0 0.0
    %758 = vmatpush1.msra.mxu0 0.0
    %759 = vmatprep.subr.mxu0 0.0
    %760 = vmatpush1.msra.mxu0 0.0
    %761 = vmatprep.subr.mxu0 0.0
    %762 = vmatpush1.msra.mxu0 0.0
    %763 = vmatprep.subr.mxu0 0.0
    %764 = vmatpush1.msra.mxu0 0.0
    %765 = vmatprep.subr.mxu0 0.0
    %766 = vmatpush1.msra.mxu0 0.0
    %767 = vmatprep.subr.mxu0 0.0
    %768 = vmatpush1.msra.mxu0 0.0
    %769 = vmatprep.subr.mxu0 0.0
    %770 = vmatpush1.msra.mxu0 0.0
    %771 = vmatprep.subr.mxu0 0.0
    %772 = vmatpush1.msra.mxu0 0.0
    %773 = vmatprep.subr.mxu0 0.0
    %774 = vmatpush1.msra.mxu0 0.0
    %775 = vmatprep.subr.mxu0 0.0
    %776 = vmatpush1.msra.mxu0 0.0
    %777 = vmatprep.subr.mxu0 0.0
    %778 = vmatpush1.msra.mxu0 0.0
    %779 = vmatprep.mubr.f32.mxu0 0.0
    %780 = vmatmul.mubr.f32.gmra.mrb[0].mxu0 %v707
    %v781 = vpop.f32.mrb[0].mxu0
    %v782 = vadd.f32 0.0, %v781
    %v783 = vpop.f32.mrb[0].mxu0
    %784 = vmatprep.mubr.f32.mxu0 0.0
    %785 = vmatmul.mubr.f32.gmra.mrb[0].mxu0 %v709
    %v786 = vpop.f32.mrb[0].mxu0
    %v787 = vadd.f32 0.0, %v786
    %v788 = vpop.f32.mrb[0].mxu0
    %789 = vmatprep.mubr.f32.mxu0 0.0
    %790 = vmatmul.mubr.f32.gmra.mrb[0].mxu0 %v711
    %v791 = vpop.f32.mrb[0].mxu0
    %v792 = vadd.f32 0.0, %v791
    %v793 = vpop.f32.mrb[0].mxu0
    %794 = vmatprep.mubr.f32.mxu0 0.0
    %795 = vmatmul.mubr.f32.gmra.mrb[0].mxu0 %v713
    %v796 = vpop.f32.mrb[0].mxu0
    %v797 = vadd.f32 0.0, %v796
    %v798 = vpop.f32.mrb[0].mxu0
    %799 = vdwg.mxu0
    %v800 = vadd.f32 %v688, %v782
    %v801 = vadd.f32 %v693, %v787
    %v802 = vadd.f32 %v698, %v792
    %v803 = vadd.f32 %v703, %v797
    %v804 = vsel %vm339, %v313, 0
    %v806 = vsel %vm339, %v315, 0
    %v808 = vsel %vm339, %v317, 0
    %v811 = vsel %vm339, %v321, 0
    %813 = vmatprep.subr.mxu0 0.0
    %814 = vmatpush1.msra.mxu0 %v334
    %815 = vmatprep.subr.mxu0 0.0
    %816 = vmatpush1.msra.mxu0 %v335
    %817 = vmatprep.subr.mxu0 0.0
    %818 = vmatpush1.msra.mxu0 %v336
    %819 = vmatprep.subr.mxu0 0.0
    %820 = vmatpush1.msra.mxu0 %v337
    %821 = vmatprep.subr.mxu0 0.0
    %822 = vmatpush1.msra.mxu0 0.0
    %823 = vmatprep.subr.mxu0 0.0
    %824 = vmatpush1.msra.mxu0 0.0
    %825 = vmatprep.subr.mxu0 0.0
    %826 = vmatpush1.msra.mxu0 0.0
    %827 = vmatprep.subr.mxu0 0.0
    %828 = vmatpush1.msra.mxu0 0.0
    %829 = vmatprep.subr.mxu0 0.0
    %830 = vmatpush1.msra.mxu0 0.0
    %831 = vmatprep.subr.mxu0 0.0
    %832 = vmatpush1.msra.mxu0 0.0
    %833 = vmatprep.subr.mxu0 0.0
    %834 = vmatpush1.msra.mxu0 0.0
    %835 = vmatprep.subr.mxu0 0.0
    %836 = vmatpush1.msra.mxu0 0.0
    %837 = vmatprep.subr.mxu0 0.0
    %838 = vmatpush1.msra.mxu0 0.0
    %839 = vmatprep.subr.mxu0 0.0
    %840 = vmatpush1.msra.mxu0 0.0
    %841 = vmatprep.subr.mxu0 0.0
    %842 = vmatpush1.msra.mxu0 0.0
    %843 = vmatprep.subr.mxu0 0.0
    %844 = vmatpush1.msra.mxu0 0.0
    %845 = vmatprep.subr.mxu0 0.0
    %846 = vmatpush1.msra.mxu0 0.0
    %847 = vmatprep.subr.mxu0 0.0
    %848 = vmatpush1.msra.mxu0 0.0
    %849 = vmatprep.subr.mxu0 0.0
    %850 = vmatpush1.msra.mxu0 0.0
    %851 = vmatprep.subr.mxu0 0.0
    %852 = vmatpush1.msra.mxu0 0.0
    %853 = vmatprep.subr.mxu0 0.0
    %854 = vmatpush1.msra.mxu0 0.0
    %855 = vmatprep.subr.mxu0 0.0
    %856 = vmatpush1.msra.mxu0 0.0
    %857 = vmatprep.subr.mxu0 0.0
    %858 = vmatpush1.msra.mxu0 0.0
    %859 = vmatprep.subr.mxu0 0.0
    %860 = vmatpush1.msra.mxu0 0.0
    %861 = vmatprep.subr.mxu0 0.0
    %862 = vmatpush1.msra.mxu0 0.0
    %863 = vmatprep.subr.mxu0 0.0
    %864 = vmatpush1.msra.mxu0 0.0
    %865 = vmatprep.subr.mxu0 0.0
    %866 = vmatpush1.msra.mxu0 0.0
    %867 = vmatprep.subr.mxu0 0.0
    %868 = vmatpush1.msra.mxu0 0.0
    %869 = vmatprep.subr.mxu0 0.0
    %870 = vmatpush1.msra.mxu0 0.0
    %871 = vmatprep.subr.mxu0 0.0
    %872 = vmatpush1.msra.mxu0 0.0
    %873 = vmatprep.subr.mxu0 0.0
    %874 = vmatpush1.msra.mxu0 0.0
    %875 = vmatprep.subr.mxu0 0.0
    %876 = vmatpush1.msra.mxu0 0.0
    %877 = vmatprep.mubr.f32.mxu0 0.0
    %878 = vmatmul.mubr.f32.gmra.mrb[0].mxu0 %v804
    %v879 = vpop.f32.mrb[0].mxu0
    %v880 = vadd.f32 0.0, %v879
    %v881 = vpop.f32.mrb[0].mxu0
    %882 = vmatprep.mubr.f32.mxu0 0.0
    %883 = vmatmul.mubr.f32.gmra.mrb[0].mxu0 %v806
    %v884 = vpop.f32.mrb[0].mxu0
    %v885 = vadd.f32 0.0, %v884
    %v886 = vpop.f32.mrb[0].mxu0
    %887 = vmatprep.mubr.f32.mxu0 0.0
    %888 = vmatmul.mubr.f32.gmra.mrb[0].mxu0 %v808
    %v889 = vpop.f32.mrb[0].mxu0
    %v890 = vadd.f32 0.0, %v889
    %v891 = vpop.f32.mrb[0].mxu0
    %892 = vmatprep.mubr.f32.mxu0 0.0
    %893 = vmatmul.mubr.f32.gmra.mrb[0].mxu0 %v811
    %v894 = vpop.f32.mrb[0].mxu0
    %v895 = vadd.f32 0.0, %v894
    %v896 = vpop.f32.mrb[0].mxu0
    %897 = vdwg.mxu0
    %v898 = vadd.f32 %v800, %v880
    %v899 = vadd.f32 %v801, %v885
    %v900 = vadd.f32 %v802, %v890
    %v901 = vadd.f32 %v803, %v895
    %v902 = vadd.f32 %v898, %v531
    %v903 = vadd.f32 %v899, %v531
    %v904 = vadd.f32 %v900, %v531
    %v905 = vadd.f32 %v901, %v531
    %v906 = vmax.f32 %v532, %v902
    %v907 = vmax.f32 %v533, %v903
    %v908 = vmax.f32 %v534, %v904
    %v909 = vmax.f32 %v535, %v905
    %v910 = vmax.f32 %v906, 0.0
    %v911 = vmax.f32 %v907, 0.0
    %v912 = vmax.f32 %v908, 0.0
    %v913 = vmax.f32 %v909, 0.0
    %v914 = vld [vmem:[%s1 + $0xb8] sm:$0xff]
    %v915 = vld [vmem:[%s1 + $0xc0] sm:$0xff]
    %v916 = vld [vmem:[%s1 + $0xc8] sm:$0xff]
    %v917 = vld [vmem:[%s1 + $0xd0] sm:$0xff]
    %v918 = vld [vmem:[%s1 + $0xd8] sm:$0x1]
    %v919 = vlaneseq
    %v920 = vshrl.u32 %v919, 7
    %v921 = vsub.s32 0, %v920
    %v922 = vrot.slane %v918, %v921
    %v924 = vsel %vm339, %v910, 0
    %v927 = vsel %vm339, %v911, 0
    %v930 = vsel %vm339, %v912, 0
    %v933 = vsel %vm339, %v913, 0
    %935 = vmatprep.subr.mxu0 0.0
    %936 = vmatpush1.msra.mxu0 %v914
    %937 = vmatprep.subr.mxu0 0.0
    %938 = vmatpush1.msra.mxu0 %v915
    %939 = vmatprep.subr.mxu0 0.0
    %940 = vmatpush1.msra.mxu0 %v916
    %941 = vmatprep.subr.mxu0 0.0
    %942 = vmatpush1.msra.mxu0 %v917
    %943 = vmatprep.subr.mxu0 0.0
    %944 = vmatpush1.msra.mxu0 0.0
    %945 = vmatprep.subr.mxu0 0.0
    %946 = vmatpush1.msra.mxu0 0.0
    %947 = vmatprep.subr.mxu0 0.0
    %948 = vmatpush1.msra.mxu0 0.0
    %949 = vmatprep.subr.mxu0 0.0
    %950 = vmatpush1.msra.mxu0 0.0
    %951 = vmatprep.subr.mxu0 0.0
    %952 = vmatpush1.msra.mxu0 0.0
    %953 = vmatprep.subr.mxu0 0.0
    %954 = vmatpush1.msra.mxu0 0.0
    %955 = vmatprep.subr.mxu0 0.0
    %956 = vmatpush1.msra.mxu0 0.0
    %957 = vmatprep.subr.mxu0 0.0
    %958 = vmatpush1.msra.mxu0 0.0
    %959 = vmatprep.subr.mxu0 0.0
    %960 = vmatpush1.msra.mxu0 0.0
    %961 = vmatprep.subr.mxu0 0.0
    %962 = vmatpush1.msra.mxu0 0.0
    %963 = vmatprep.subr.mxu0 0.0
    %964 = vmatpush1.msra.mxu0 0.0
    %965 = vmatprep.subr.mxu0 0.0
    %966 = vmatpush1.msra.mxu0 0.0
    %967 = vmatprep.subr.mxu0 0.0
    %968 = vmatpush1.msra.mxu0 0.0
    %969 = vmatprep.subr.mxu0 0.0
    %970 = vmatpush1.msra.mxu0 0.0
    %971 = vmatprep.subr.mxu0 0.0
    %972 = vmatpush1.msra.mxu0 0.0
    %973 = vmatprep.subr.mxu0 0.0
    %974 = vmatpush1.msra.mxu0 0.0
    %975 = vmatprep.subr.mxu0 0.0
    %976 = vmatpush1.msra.mxu0 0.0
    %977 = vmatprep.subr.mxu0 0.0
    %978 = vmatpush1.msra.mxu0 0.0
    %979 = vmatprep.subr.mxu0 0.0
    %980 = vmatpush1.msra.mxu0 0.0
    %981 = vmatprep.subr.mxu0 0.0
    %982 = vmatpush1.msra.mxu0 0.0
    %983 = vmatprep.subr.mxu0 0.0
    %984 = vmatpush1.msra.mxu0 0.0
    %985 = vmatprep.subr.mxu0 0.0
    %986 = vmatpush1.msra.mxu0 0.0
    %987 = vmatprep.subr.mxu0 0.0
    %988 = vmatpush1.msra.mxu0 0.0
    %989 = vmatprep.subr.mxu0 0.0
    %990 = vmatpush1.msra.mxu0 0.0
    %991 = vmatprep.subr.mxu0 0.0
    %992 = vmatpush1.msra.mxu0 0.0
    %993 = vmatprep.subr.mxu0 0.0
    %994 = vmatpush1.msra.mxu0 0.0
    %995 = vmatprep.subr.mxu0 0.0
    %996 = vmatpush1.msra.mxu0 0.0
    %997 = vmatprep.subr.mxu0 0.0
    %998 = vmatpush1.msra.mxu0 0.0
    %999 = vmatprep.mubr.f32.mxu0 0.0
    %1000 = vmatmul.mubr.f32.gmra.mrb[0].mxu0 %v924
    %v1001 = vpop.f32.mrb[0].mxu0
    %v1002 = vadd.f32 %v922, %v1001
    %v1003 = vpop.f32.mrb[0].mxu0
    %1004 = vmatprep.mubr.f32.mxu0 0.0
    %1005 = vmatmul.mubr.f32.gmra.mrb[0].mxu0 %v927
    %v1006 = vpop.f32.mrb[0].mxu0
    %v1007 = vadd.f32 %v922, %v1006
    %v1008 = vpop.f32.mrb[0].mxu0
    %1009 = vmatprep.mubr.f32.mxu0 0.0
    %1010 = vmatmul.mubr.f32.gmra.mrb[0].mxu0 %v930
    %v1011 = vpop.f32.mrb[0].mxu0
    %v1012 = vadd.f32 %v922, %v1011
    %v1013 = vpop.f32.mrb[0].mxu0
    %1014 = vmatprep.mubr.f32.mxu0 0.0
    %1015 = vmatmul.mubr.f32.gmra.mrb[0].mxu0 %v933
    %v1016 = vpop.f32.mrb[0].mxu0
    %v1017 = vadd.f32 %v922, %v1016
    %v1018 = vpop.f32.mrb[0].mxu0
    %1019 = vdwg.mxu0
    %v1021 = vrot.slane %v1017, 6
    %v1023 = vrot.slane %v1017, 2
    %v1026 = vrot.slane %v1012, 6
    %v1028 = vrot.slane %v1012, 2
    %v1031 = vrot.slane %v1007, 6
    %v1033 = vrot.slane %v1007, 2
    %v1036 = vrot.slane %v1002, 6
    %v1038 = vrot.slane %v1002, 2
    %v1040 = vsel %vm285, %v1021, %v1023
    %v1041 = vsel %vm83, %v1040, %v1021
    %v1042 = vsel %vm295, %v1041, %v1023
    %v1043 = vsel %vm285, %v1026, %v1028
    %v1044 = vsel %vm83, %v1043, %v1026
    %v1045 = vsel %vm295, %v1044, %v1028
    %v1046 = vsel %vm285, %v1031, %v1033
    %v1047 = vsel %vm83, %v1046, %v1031
    %v1048 = vsel %vm295, %v1047, %v1033
    %v1049 = vsel %vm285, %v1036, %v1038
    %v1050 = vsel %vm83, %v1049, %v1036
    %v1051 = vsel %vm295, %v1050, %v1038
    %v1052 = vsel %vm339, %v1002, %v1042
    %v1053 = vsel %vm339, %v1007, %v1045
    %v1054 = vsel %vm339, %v1012, %v1048
    %v1055 = vsel %vm339, %v1017, %v1051
    %v1056 = vld [vmem:[%s1 + $0xe0] sm:$0xff]
    %v1057 = vld [vmem:[%s1 + $0xe8] sm:$0xff]
    %v1058 = vld [vmem:[%s1 + $0xf0] sm:$0xff]
    %v1059 = vld [vmem:[%s1 + $0xf8] sm:$0xff]
    %v1060 = vld [vmem:[%s1 + $0x100] sm:$0xff]
    %v1061 = vld [vmem:[%s1 + $0x108] sm:$0xff]
    %v1062 = vld [vmem:[%s1 + $0x110] sm:$0xff]
    %v1063 = vld [vmem:[%s1 + $0x118] sm:$0xff]
    %vm1064 = vcmask 523264
    %v1066 = vsel %vm1064, 0.0, 0
    %1068 = vmatprep.subr.mxu0 0.0
    %1069 = vmatpush1.msra.mxu0 %v1056
    %1070 = vmatprep.subr.mxu0 0.0
    %1071 = vmatpush1.msra.mxu0 %v1057
    %1072 = vmatprep.subr.mxu0 0.0
    %1073 = vmatpush1.msra.mxu0 %v1058
    %1074 = vmatprep.subr.mxu0 0.0
    %1075 = vmatpush1.msra.mxu0 %v1059
    %1076 = vmatprep.subr.mxu0 0.0
    %1077 = vmatpush1.msra.mxu0 %v1060
    %1078 = vmatprep.subr.mxu0 0.0
    %1079 = vmatpush1.msra.mxu0 %v1061
    %1080 = vmatprep.subr.mxu0 0.0
    %1081 = vmatpush1.msra.mxu0 %v1062
    %1082 = vmatprep.subr.mxu0 0.0
    %1083 = vmatpush1.msra.mxu0 %v1063
    %1084 = vmatprep.subr.mxu0 0.0
    %1085 = vmatpush1.msra.mxu0 0.0
    %1086 = vmatprep.subr.mxu0 0.0
    %1087 = vmatpush1.msra.mxu0 0.0
    %1088 = vmatprep.subr.mxu0 0.0
    %1089 = vmatpush1.msra.mxu0 0.0
    %1090 = vmatprep.subr.mxu0 0.0
    %1091 = vmatpush1.msra.mxu0 0.0
    %1092 = vmatprep.subr.mxu0 0.0
    %1093 = vmatpush1.msra.mxu0 0.0
    %1094 = vmatprep.subr.mxu0 0.0
    %1095 = vmatpush1.msra.mxu0 0.0
    %1096 = vmatprep.subr.mxu0 0.0
    %1097 = vmatpush1.msra.mxu0 0.0
    %1098 = vmatprep.subr.mxu0 0.0
    %1099 = vmatpush1.msra.mxu0 0.0
    %1100 = vmatprep.subr.mxu0 0.0
    %1101 = vmatpush1.msra.mxu0 0.0
    %1102 = vmatprep.subr.mxu0 0.0
    %1103 = vmatpush1.msra.mxu0 0.0
    %1104 = vmatprep.subr.mxu0 0.0
    %1105 = vmatpush1.msra.mxu0 0.0
    %1106 = vmatprep.subr.mxu0 0.0
    %1107 = vmatpush1.msra.mxu0 0.0
    %1108 = vmatprep.subr.mxu0 0.0
    %1109 = vmatpush1.msra.mxu0 0.0
    %1110 = vmatprep.subr.mxu0 0.0
    %1111 = vmatpush1.msra.mxu0 0.0
    %1112 = vmatprep.subr.mxu0 0.0
    %1113 = vmatpush1.msra.mxu0 0.0
    %1114 = vmatprep.subr.mxu0 0.0
    %1115 = vmatpush1.msra.mxu0 0.0
    %1116 = vmatprep.subr.mxu0 0.0
    %1117 = vmatpush1.msra.mxu0 0.0
    %1118 = vmatprep.subr.mxu0 0.0
    %1119 = vmatpush1.msra.mxu0 0.0
    %1120 = vmatprep.subr.mxu0 0.0
    %1121 = vmatpush1.msra.mxu0 0.0
    %1122 = vmatprep.subr.mxu0 0.0
    %1123 = vmatpush1.msra.mxu0 0.0
    %1124 = vmatprep.subr.mxu0 0.0
    %1125 = vmatpush1.msra.mxu0 0.0
    %1126 = vmatprep.subr.mxu0 0.0
    %1127 = vmatpush1.msra.mxu0 0.0
    %1128 = vmatprep.subr.mxu0 0.0
    %1129 = vmatpush1.msra.mxu0 0.0
    %1130 = vmatprep.subr.mxu0 0.0
    %1131 = vmatpush1.msra.mxu0 0.0
    %1132 = vmatprep.mubr.f32.mxu0 0.0
    %1133 = vmatmul.mubr.f32.gmra.mrb[0].mxu0 %v1066
    %v1134 = vpop.f32.mrb[0].mxu0
    %v1135 = vadd.f32 0.0, %v1134
    %v1136 = vpop.f32.mrb[0].mxu0
    %1137 = vdwg.mxu0
    %v1138 = vadd.f32 %v1052, %v1135
    %v1139 = vtanh.pop %v1138
    %v1141 = vsel %vm1064, %v1139, 0
    %1143 = vmatprep.subr.mxu0 0.0
    %1144 = vmatpush1.msra.mxu0 %v1056
    %1145 = vmatprep.subr.mxu0 0.0
    %1146 = vmatpush1.msra.mxu0 %v1057
    %1147 = vmatprep.subr.mxu0 0.0
    %1148 = vmatpush1.msra.mxu0 %v1058
    %1149 = vmatprep.subr.mxu0 0.0
    %1150 = vmatpush1.msra.mxu0 %v1059
    %1151 = vmatprep.subr.mxu0 0.0
    %1152 = vmatpush1.msra.mxu0 %v1060
    %1153 = vmatprep.subr.mxu0 0.0
    %1154 = vmatpush1.msra.mxu0 %v1061
    %1155 = vmatprep.subr.mxu0 0.0
    %1156 = vmatpush1.msra.mxu0 %v1062
    %1157 = vmatprep.subr.mxu0 0.0
    %1158 = vmatpush1.msra.mxu0 %v1063
    %1159 = vmatprep.subr.mxu0 0.0
    %1160 = vmatpush1.msra.mxu0 0.0
    %1161 = vmatprep.subr.mxu0 0.0
    %1162 = vmatpush1.msra.mxu0 0.0
    %1163 = vmatprep.subr.mxu0 0.0
    %1164 = vmatpush1.msra.mxu0 0.0
    %1165 = vmatprep.subr.mxu0 0.0
    %1166 = vmatpush1.msra.mxu0 0.0
    %1167 = vmatprep.subr.mxu0 0.0
    %1168 = vmatpush1.msra.mxu0 0.0
    %1169 = vmatprep.subr.mxu0 0.0
    %1170 = vmatpush1.msra.mxu0 0.0
    %1171 = vmatprep.subr.mxu0 0.0
    %1172 = vmatpush1.msra.mxu0 0.0
    %1173 = vmatprep.subr.mxu0 0.0
    %1174 = vmatpush1.msra.mxu0 0.0
    %1175 = vmatprep.subr.mxu0 0.0
    %1176 = vmatpush1.msra.mxu0 0.0
    %1177 = vmatprep.subr.mxu0 0.0
    %1178 = vmatpush1.msra.mxu0 0.0
    %1179 = vmatprep.subr.mxu0 0.0
    %1180 = vmatpush1.msra.mxu0 0.0
    %1181 = vmatprep.subr.mxu0 0.0
    %1182 = vmatpush1.msra.mxu0 0.0
    %1183 = vmatprep.subr.mxu0 0.0
    %1184 = vmatpush1.msra.mxu0 0.0
    %1185 = vmatprep.subr.mxu0 0.0
    %1186 = vmatpush1.msra.mxu0 0.0
    %1187 = vmatprep.subr.mxu0 0.0
    %1188 = vmatpush1.msra.mxu0 0.0
    %1189 = vmatprep.subr.mxu0 0.0
    %1190 = vmatpush1.msra.mxu0 0.0
    %1191 = vmatprep.subr.mxu0 0.0
    %1192 = vmatpush1.msra.mxu0 0.0
    %1193 = vmatprep.subr.mxu0 0.0
    %1194 = vmatpush1.msra.mxu0 0.0
    %1195 = vmatprep.subr.mxu0 0.0
    %1196 = vmatpush1.msra.mxu0 0.0
    %1197 = vmatprep.subr.mxu0 0.0
    %1198 = vmatpush1.msra.mxu0 0.0
    %1199 = vmatprep.subr.mxu0 0.0
    %1200 = vmatpush1.msra.mxu0 0.0
    %1201 = vmatprep.subr.mxu0 0.0
    %1202 = vmatpush1.msra.mxu0 0.0
    %1203 = vmatprep.subr.mxu0 0.0
    %1204 = vmatpush1.msra.mxu0 0.0
    %1205 = vmatprep.subr.mxu0 0.0
    %1206 = vmatpush1.msra.mxu0 0.0
    %1207 = vmatprep.mubr.f32.mxu0 0.0
    %1208 = vmatmul.mubr.f32.gmra.mrb[0].mxu0 %v1141
    %v1209 = vpop.f32.mrb[0].mxu0
    %v1210 = vadd.f32 0.0, %v1209
    %v1211 = vpop.f32.mrb[0].mxu0
    %1212 = vdwg.mxu0
    %v1214 = vrot.slane %v1210, 6
    %v1216 = vadd.f32 %v1052, %v1214
    %v1217 = vtanh.pop %v1216
    %v1219 = vrot.slane %v1217, 2
    %v1220 = vsel %vm1064, %v1219, 0
    %1222 = vmatprep.subr.mxu0 0.0
    %1223 = vmatpush1.msra.mxu0 %v1056
    %1224 = vmatprep.subr.mxu0 0.0
    %1225 = vmatpush1.msra.mxu0 %v1057
    %1226 = vmatprep.subr.mxu0 0.0
    %1227 = vmatpush1.msra.mxu0 %v1058
    %1228 = vmatprep.subr.mxu0 0.0
    %1229 = vmatpush1.msra.mxu0 %v1059
    %1230 = vmatprep.subr.mxu0 0.0
    %1231 = vmatpush1.msra.mxu0 %v1060
    %1232 = vmatprep.subr.mxu0 0.0
    %1233 = vmatpush1.msra.mxu0 %v1061
    %1234 = vmatprep.subr.mxu0 0.0
    %1235 = vmatpush1.msra.mxu0 %v1062
    %1236 = vmatprep.subr.mxu0 0.0
    %1237 = vmatpush1.msra.mxu0 %v1063
    %1238 = vmatprep.subr.mxu0 0.0
    %1239 = vmatpush1.msra.mxu0 0.0
    %1240 = vmatprep.subr.mxu0 0.0
    %1241 = vmatpush1.msra.mxu0 0.0
    %1242 = vmatprep.subr.mxu0 0.0
    %1243 = vmatpush1.msra.mxu0 0.0
    %1244 = vmatprep.subr.mxu0 0.0
    %1245 = vmatpush1.msra.mxu0 0.0
    %1246 = vmatprep.subr.mxu0 0.0
    %1247 = vmatpush1.msra.mxu0 0.0
    %1248 = vmatprep.subr.mxu0 0.0
    %1249 = vmatpush1.msra.mxu0 0.0
    %1250 = vmatprep.subr.mxu0 0.0
    %1251 = vmatpush1.msra.mxu0 0.0
    %1252 = vmatprep.subr.mxu0 0.0
    %1253 = vmatpush1.msra.mxu0 0.0
    %1254 = vmatprep.subr.mxu0 0.0
    %1255 = vmatpush1.msra.mxu0 0.0
    %1256 = vmatprep.subr.mxu0 0.0
    %1257 = vmatpush1.msra.mxu0 0.0
    %1258 = vmatprep.subr.mxu0 0.0
    %1259 = vmatpush1.msra.mxu0 0.0
    %1260 = vmatprep.subr.mxu0 0.0
    %1261 = vmatpush1.msra.mxu0 0.0
    %1262 = vmatprep.subr.mxu0 0.0
    %1263 = vmatpush1.msra.mxu0 0.0
    %1264 = vmatprep.subr.mxu0 0.0
    %1265 = vmatpush1.msra.mxu0 0.0
    %1266 = vmatprep.subr.mxu0 0.0
    %1267 = vmatpush1.msra.mxu0 0.0
    %1268 = vmatprep.subr.mxu0 0.0
    %1269 = vmatpush1.msra.mxu0 0.0
    %1270 = vmatprep.subr.mxu0 0.0
    %1271 = vmatpush1.msra.mxu0 0.0
    %1272 = vmatprep.subr.mxu0 0.0
    %1273 = vmatpush1.msra.mxu0 0.0
    %1274 = vmatprep.subr.mxu0 0.0
    %1275 = vmatpush1.msra.mxu0 0.0
    %1276 = vmatprep.subr.mxu0 0.0
    %1277 = vmatpush1.msra.mxu0 0.0
    %1278 = vmatprep.subr.mxu0 0.0
    %1279 = vmatpush1.msra.mxu0 0.0
    %1280 = vmatprep.subr.mxu0 0.0
    %1281 = vmatpush1.msra.mxu0 0.0
    %1282 = vmatprep.subr.mxu0 0.0
    %1283 = vmatpush1.msra.mxu0 0.0
    %1284 = vmatprep.subr.mxu0 0.0
    %1285 = vmatpush1.msra.mxu0 0.0
    %1286 = vmatprep.mubr.f32.mxu0 0.0
    %1287 = vmatmul.mubr.f32.gmra.mrb[0].mxu0 %v1220
    %v1288 = vpop.f32.mrb[0].mxu0
    %v1289 = vadd.f32 0.0, %v1288
    %v1290 = vpop.f32.mrb[0].mxu0
    %1291 = vdwg.mxu0
    %v1293 = vrot.slane %v1289, 4
    %v1295 = vadd.f32 %v1052, %v1293
    %v1296 = vtanh.pop %v1295
    %v1298 = vrot.slane %v1296, 4
    %v1299 = vsel %vm1064, %v1298, 0
    %1301 = vmatprep.subr.mxu0 0.0
    %1302 = vmatpush1.msra.mxu0 %v1056
    %1303 = vmatprep.subr.mxu0 0.0
    %1304 = vmatpush1.msra.mxu0 %v1057
    %1305 = vmatprep.subr.mxu0 0.0
    %1306 = vmatpush1.msra.mxu0 %v1058
    %1307 = vmatprep.subr.mxu0 0.0
    %1308 = vmatpush1.msra.mxu0 %v1059
    %1309 = vmatprep.subr.mxu0 0.0
    %1310 = vmatpush1.msra.mxu0 %v1060
    %1311 = vmatprep.subr.mxu0 0.0
    %1312 = vmatpush1.msra.mxu0 %v1061
    %1313 = vmatprep.subr.mxu0 0.0
    %1314 = vmatpush1.msra.mxu0 %v1062
    %1315 = vmatprep.subr.mxu0 0.0
    %1316 = vmatpush1.msra.mxu0 %v1063
    %1317 = vmatprep.subr.mxu0 0.0
    %1318 = vmatpush1.msra.mxu0 0.0
    %1319 = vmatprep.subr.mxu0 0.0
    %1320 = vmatpush1.msra.mxu0 0.0
    %1321 = vmatprep.subr.mxu0 0.0
    %1322 = vmatpush1.msra.mxu0 0.0
    %1323 = vmatprep.subr.mxu0 0.0
    %1324 = vmatpush1.msra.mxu0 0.0
    %1325 = vmatprep.subr.mxu0 0.0
    %1326 = vmatpush1.msra.mxu0 0.0
    %1327 = vmatprep.subr.mxu0 0.0
    %1328 = vmatpush1.msra.mxu0 0.0
    %1329 = vmatprep.subr.mxu0 0.0
    %1330 = vmatpush1.msra.mxu0 0.0
    %1331 = vmatprep.subr.mxu0 0.0
    %1332 = vmatpush1.msra.mxu0 0.0
    %1333 = vmatprep.subr.mxu0 0.0
    %1334 = vmatpush1.msra.mxu0 0.0
    %1335 = vmatprep.subr.mxu0 0.0
    %1336 = vmatpush1.msra.mxu0 0.0
    %1337 = vmatprep.subr.mxu0 0.0
    %1338 = vmatpush1.msra.mxu0 0.0
    %1339 = vmatprep.subr.mxu0 0.0
    %1340 = vmatpush1.msra.mxu0 0.0
    %1341 = vmatprep.subr.mxu0 0.0
    %1342 = vmatpush1.msra.mxu0 0.0
    %1343 = vmatprep.subr.mxu0 0.0
    %1344 = vmatpush1.msra.mxu0 0.0
    %1345 = vmatprep.subr.mxu0 0.0
    %1346 = vmatpush1.msra.mxu0 0.0
    %1347 = vmatprep.subr.mxu0 0.0
    %1348 = vmatpush1.msra.mxu0 0.0
    %1349 = vmatprep.subr.mxu0 0.0
    %1350 = vmatpush1.msra.mxu0 0.0
    %1351 = vmatprep.subr.mxu0 0.0
    %1352 = vmatpush1.msra.mxu0 0.0
    %1353 = vmatprep.subr.mxu0 0.0
    %1354 = vmatpush1.msra.mxu0 0.0
    %1355 = vmatprep.subr.mxu0 0.0
    %1356 = vmatpush1.msra.mxu0 0.0
    %1357 = vmatprep.subr.mxu0 0.0
    %1358 = vmatpush1.msra.mxu0 0.0
    %1359 = vmatprep.subr.mxu0 0.0
    %1360 = vmatpush1.msra.mxu0 0.0
    %1361 = vmatprep.subr.mxu0 0.0
    %1362 = vmatpush1.msra.mxu0 0.0
    %1363 = vmatprep.subr.mxu0 0.0
    %1364 = vmatpush1.msra.mxu0 0.0
    %1365 = vmatprep.mubr.f32.mxu0 0.0
    %1366 = vmatmul.mubr.f32.gmra.mrb[0].mxu0 %v1299
    %v1367 = vpop.f32.mrb[0].mxu0
    %v1368 = vadd.f32 0.0, %v1367
    %v1369 = vpop.f32.mrb[0].mxu0
    %1370 = vdwg.mxu0
    %v1372 = vrot.slane %v1368, 2
    %v1374 = vadd.f32 %v1052, %v1372
    %v1375 = vtanh.pop %v1374
    %v1377 = vrot.slane %v1375, 6
    %v1378 = vsel %vm1064, %v1377, 0
    %1380 = vmatprep.subr.mxu0 0.0
    %1381 = vmatpush1.msra.mxu0 %v1056
    %1382 = vmatprep.subr.mxu0 0.0
    %1383 = vmatpush1.msra.mxu0 %v1057
    %1384 = vmatprep.subr.mxu0 0.0
    %1385 = vmatpush1.msra.mxu0 %v1058
    %1386 = vmatprep.subr.mxu0 0.0
    %1387 = vmatpush1.msra.mxu0 %v1059
    %1388 = vmatprep.subr.mxu0 0.0
    %1389 = vmatpush1.msra.mxu0 %v1060
    %1390 = vmatprep.subr.mxu0 0.0
    %1391 = vmatpush1.msra.mxu0 %v1061
    %1392 = vmatprep.subr.mxu0 0.0
    %1393 = vmatpush1.msra.mxu0 %v1062
    %1394 = vmatprep.subr.mxu0 0.0
    %1395 = vmatpush1.msra.mxu0 %v1063
    %1396 = vmatprep.subr.mxu0 0.0
    %1397 = vmatpush1.msra.mxu0 0.0
    %1398 = vmatprep.subr.mxu0 0.0
    %1399 = vmatpush1.msra.mxu0 0.0
    %1400 = vmatprep.subr.mxu0 0.0
    %1401 = vmatpush1.msra.mxu0 0.0
    %1402 = vmatprep.subr.mxu0 0.0
    %1403 = vmatpush1.msra.mxu0 0.0
    %1404 = vmatprep.subr.mxu0 0.0
    %1405 = vmatpush1.msra.mxu0 0.0
    %1406 = vmatprep.subr.mxu0 0.0
    %1407 = vmatpush1.msra.mxu0 0.0
    %1408 = vmatprep.subr.mxu0 0.0
    %1409 = vmatpush1.msra.mxu0 0.0
    %1410 = vmatprep.subr.mxu0 0.0
    %1411 = vmatpush1.msra.mxu0 0.0
    %1412 = vmatprep.subr.mxu0 0.0
    %1413 = vmatpush1.msra.mxu0 0.0
    %1414 = vmatprep.subr.mxu0 0.0
    %1415 = vmatpush1.msra.mxu0 0.0
    %1416 = vmatprep.subr.mxu0 0.0
    %1417 = vmatpush1.msra.mxu0 0.0
    %1418 = vmatprep.subr.mxu0 0.0
    %1419 = vmatpush1.msra.mxu0 0.0
    %1420 = vmatprep.subr.mxu0 0.0
    %1421 = vmatpush1.msra.mxu0 0.0
    %1422 = vmatprep.subr.mxu0 0.0
    %1423 = vmatpush1.msra.mxu0 0.0
    %1424 = vmatprep.subr.mxu0 0.0
    %1425 = vmatpush1.msra.mxu0 0.0
    %1426 = vmatprep.subr.mxu0 0.0
    %1427 = vmatpush1.msra.mxu0 0.0
    %1428 = vmatprep.subr.mxu0 0.0
    %1429 = vmatpush1.msra.mxu0 0.0
    %1430 = vmatprep.subr.mxu0 0.0
    %1431 = vmatpush1.msra.mxu0 0.0
    %1432 = vmatprep.subr.mxu0 0.0
    %1433 = vmatpush1.msra.mxu0 0.0
    %1434 = vmatprep.subr.mxu0 0.0
    %1435 = vmatpush1.msra.mxu0 0.0
    %1436 = vmatprep.subr.mxu0 0.0
    %1437 = vmatpush1.msra.mxu0 0.0
    %1438 = vmatprep.subr.mxu0 0.0
    %1439 = vmatpush1.msra.mxu0 0.0
    %1440 = vmatprep.subr.mxu0 0.0
    %1441 = vmatpush1.msra.mxu0 0.0
    %1442 = vmatprep.subr.mxu0 0.0
    %1443 = vmatpush1.msra.mxu0 0.0
    %1444 = vmatprep.mubr.f32.mxu0 0.0
    %1445 = vmatmul.mubr.f32.gmra.mrb[0].mxu0 %v1378
    %v1446 = vpop.f32.mrb[0].mxu0
    %v1447 = vadd.f32 0.0, %v1446
    %v1448 = vpop.f32.mrb[0].mxu0
    %1449 = vdwg.mxu0
    %v1450 = vadd.f32 %v1053, %v1447
    %v1451 = vtanh.pop %v1450
    %v1453 = vsel %vm1064, %v1451, 0
    %1455 = vmatprep.subr.mxu0 0.0
    %1456 = vmatpush1.msra.mxu0 %v1056
    %1457 = vmatprep.subr.mxu0 0.0
    %1458 = vmatpush1.msra.mxu0 %v1057
    %1459 = vmatprep.subr.mxu0 0.0
    %1460 = vmatpush1.msra.mxu0 %v1058
    %1461 = vmatprep.subr.mxu0 0.0
    %1462 = vmatpush1.msra.mxu0 %v1059
    %1463 = vmatprep.subr.mxu0 0.0
    %1464 = vmatpush1.msra.mxu0 %v1060
    %1465 = vmatprep.subr.mxu0 0.0
    %1466 = vmatpush1.msra.mxu0 %v1061
    %1467 = vmatprep.subr.mxu0 0.0
    %1468 = vmatpush1.msra.mxu0 %v1062
    %1469 = vmatprep.subr.mxu0 0.0
    %1470 = vmatpush1.msra.mxu0 %v1063
    %1471 = vmatprep.subr.mxu0 0.0
    %1472 = vmatpush1.msra.mxu0 0.0
    %1473 = vmatprep.subr.mxu0 0.0
    %1474 = vmatpush1.msra.mxu0 0.0
    %1475 = vmatprep.subr.mxu0 0.0
    %1476 = vmatpush1.msra.mxu0 0.0
    %1477 = vmatprep.subr.mxu0 0.0
    %1478 = vmatpush1.msra.mxu0 0.0
    %1479 = vmatprep.subr.mxu0 0.0
    %1480 = vmatpush1.msra.mxu0 0.0
    %1481 = vmatprep.subr.mxu0 0.0
    %1482 = vmatpush1.msra.mxu0 0.0
    %1483 = vmatprep.subr.mxu0 0.0
    %1484 = vmatpush1.msra.mxu0 0.0
    %1485 = vmatprep.subr.mxu0 0.0
    %1486 = vmatpush1.msra.mxu0 0.0
    %1487 = vmatprep.subr.mxu0 0.0
    %1488 = vmatpush1.msra.mxu0 0.0
    %1489 = vmatprep.subr.mxu0 0.0
    %1490 = vmatpush1.msra.mxu0 0.0
    %1491 = vmatprep.subr.mxu0 0.0
    %1492 = vmatpush1.msra.mxu0 0.0
    %1493 = vmatprep.subr.mxu0 0.0
    %1494 = vmatpush1.msra.mxu0 0.0
    %1495 = vmatprep.subr.mxu0 0.0
    %1496 = vmatpush1.msra.mxu0 0.0
    %1497 = vmatprep.subr.mxu0 0.0
    %1498 = vmatpush1.msra.mxu0 0.0
    %1499 = vmatprep.subr.mxu0 0.0
    %1500 = vmatpush1.msra.mxu0 0.0
    %1501 = vmatprep.subr.mxu0 0.0
    %1502 = vmatpush1.msra.mxu0 0.0
    %1503 = vmatprep.subr.mxu0 0.0
    %1504 = vmatpush1.msra.mxu0 0.0
    %1505 = vmatprep.subr.mxu0 0.0
    %1506 = vmatpush1.msra.mxu0 0.0
    %1507 = vmatprep.subr.mxu0 0.0
    %1508 = vmatpush1.msra.mxu0 0.0
    %1509 = vmatprep.subr.mxu0 0.0
    %1510 = vmatpush1.msra.mxu0 0.0
    %1511 = vmatprep.subr.mxu0 0.0
    %1512 = vmatpush1.msra.mxu0 0.0
    %1513 = vmatprep.subr.mxu0 0.0
    %1514 = vmatpush1.msra.mxu0 0.0
    %1515 = vmatprep.subr.mxu0 0.0
    %1516 = vmatpush1.msra.mxu0 0.0
    %1517 = vmatprep.subr.mxu0 0.0
    %1518 = vmatpush1.msra.mxu0 0.0
    %1519 = vmatprep.mubr.f32.mxu0 0.0
    %1520 = vmatmul.mubr.f32.gmra.mrb[0].mxu0 %v1453
    %v1521 = vpop.f32.mrb[0].mxu0
    %v1522 = vadd.f32 0.0, %v1521
    %v1523 = vpop.f32.mrb[0].mxu0
    %1524 = vdwg.mxu0
    %v1526 = vrot.slane %v1522, 6
    %v1528 = vadd.f32 %v1053, %v1526
    %v1529 = vtanh.pop %v1528
    %v1531 = vrot.slane %v1529, 2
    %v1532 = vsel %vm1064, %v1531, 0
    %1534 = vmatprep.subr.mxu0 0.0
    %1535 = vmatpush1.msra.mxu0 %v1056
    %1536 = vmatprep.subr.mxu0 0.0
    %1537 = vmatpush1.msra.mxu0 %v1057
    %1538 = vmatprep.subr.mxu0 0.0
    %1539 = vmatpush1.msra.mxu0 %v1058
    %1540 = vmatprep.subr.mxu0 0.0
    %1541 = vmatpush1.msra.mxu0 %v1059
    %1542 = vmatprep.subr.mxu0 0.0
    %1543 = vmatpush1.msra.mxu0 %v1060
    %1544 = vmatprep.subr.mxu0 0.0
    %1545 = vmatpush1.msra.mxu0 %v1061
    %1546 = vmatprep.subr.mxu0 0.0
    %1547 = vmatpush1.msra.mxu0 %v1062
    %1548 = vmatprep.subr.mxu0 0.0
    %1549 = vmatpush1.msra.mxu0 %v1063
    %1550 = vmatprep.subr.mxu0 0.0
    %1551 = vmatpush1.msra.mxu0 0.0
    %1552 = vmatprep.subr.mxu0 0.0
    %1553 = vmatpush1.msra.mxu0 0.0
    %1554 = vmatprep.subr.mxu0 0.0
    %1555 = vmatpush1.msra.mxu0 0.0
    %1556 = vmatprep.subr.mxu0 0.0
    %1557 = vmatpush1.msra.mxu0 0.0
    %1558 = vmatprep.subr.mxu0 0.0
    %1559 = vmatpush1.msra.mxu0 0.0
    %1560 = vmatprep.subr.mxu0 0.0
    %1561 = vmatpush1.msra.mxu0 0.0
    %1562 = vmatprep.subr.mxu0 0.0
    %1563 = vmatpush1.msra.mxu0 0.0
    %1564 = vmatprep.subr.mxu0 0.0
    %1565 = vmatpush1.msra.mxu0 0.0
    %1566 = vmatprep.subr.mxu0 0.0
    %1567 = vmatpush1.msra.mxu0 0.0
    %1568 = vmatprep.subr.mxu0 0.0
    %1569 = vmatpush1.msra.mxu0 0.0
    %1570 = vmatprep.subr.mxu0 0.0
    %1571 = vmatpush1.msra.mxu0 0.0
    %1572 = vmatprep.subr.mxu0 0.0
    %1573 = vmatpush1.msra.mxu0 0.0
    %1574 = vmatprep.subr.mxu0 0.0
    %1575 = vmatpush1.msra.mxu0 0.0
    %1576 = vmatprep.subr.mxu0 0.0
    %1577 = vmatpush1.msra.mxu0 0.0
    %1578 = vmatprep.subr.mxu0 0.0
    %1579 = vmatpush1.msra.mxu0 0.0
    %1580 = vmatprep.subr.mxu0 0.0
    %1581 = vmatpush1.msra.mxu0 0.0
    %1582 = vmatprep.subr.mxu0 0.0
    %1583 = vmatpush1.msra.mxu0 0.0
    %1584 = vmatprep.subr.mxu0 0.0
    %1585 = vmatpush1.msra.mxu0 0.0
    %1586 = vmatprep.subr.mxu0 0.0
    %1587 = vmatpush1.msra.mxu0 0.0
    %1588 = vmatprep.subr.mxu0 0.0
    %1589 = vmatpush1.msra.mxu0 0.0
    %1590 = vmatprep.subr.mxu0 0.0
    %1591 = vmatpush1.msra.mxu0 0.0
    %1592 = vmatprep.subr.mxu0 0.0
    %1593 = vmatpush1.msra.mxu0 0.0
    %1594 = vmatprep.subr.mxu0 0.0
    %1595 = vmatpush1.msra.mxu0 0.0
    %1596 = vmatprep.subr.mxu0 0.0
    %1597 = vmatpush1.msra.mxu0 0.0
    %1598 = vmatprep.mubr.f32.mxu0 0.0
    %1599 = vmatmul.mubr.f32.gmra.mrb[0].mxu0 %v1532
    %v1600 = vpop.f32.mrb[0].mxu0
    %v1601 = vadd.f32 0.0, %v1600
    %v1602 = vpop.f32.mrb[0].mxu0
    %1603 = vdwg.mxu0
    %v1605 = vrot.slane %v1601, 4
    %v1607 = vadd.f32 %v1053, %v1605
    %v1608 = vtanh.pop %v1607
    %v1610 = vrot.slane %v1608, 4
    %v1611 = vsel %vm1064, %v1610, 0
    %1613 = vmatprep.subr.mxu0 0.0
    %1614 = vmatpush1.msra.mxu0 %v1056
    %1615 = vmatprep.subr.mxu0 0.0
    %1616 = vmatpush1.msra.mxu0 %v1057
    %1617 = vmatprep.subr.mxu0 0.0
    %1618 = vmatpush1.msra.mxu0 %v1058
    %1619 = vmatprep.subr.mxu0 0.0
    %1620 = vmatpush1.msra.mxu0 %v1059
    %1621 = vmatprep.subr.mxu0 0.0
    %1622 = vmatpush1.msra.mxu0 %v1060
    %1623 = vmatprep.subr.mxu0 0.0
    %1624 = vmatpush1.msra.mxu0 %v1061
    %1625 = vmatprep.subr.mxu0 0.0
    %1626 = vmatpush1.msra.mxu0 %v1062
    %1627 = vmatprep.subr.mxu0 0.0
    %1628 = vmatpush1.msra.mxu0 %v1063
    %1629 = vmatprep.subr.mxu0 0.0
    %1630 = vmatpush1.msra.mxu0 0.0
    %1631 = vmatprep.subr.mxu0 0.0
    %1632 = vmatpush1.msra.mxu0 0.0
    %1633 = vmatprep.subr.mxu0 0.0
    %1634 = vmatpush1.msra.mxu0 0.0
    %1635 = vmatprep.subr.mxu0 0.0
    %1636 = vmatpush1.msra.mxu0 0.0
    %1637 = vmatprep.subr.mxu0 0.0
    %1638 = vmatpush1.msra.mxu0 0.0
    %1639 = vmatprep.subr.mxu0 0.0
    %1640 = vmatpush1.msra.mxu0 0.0
    %1641 = vmatprep.subr.mxu0 0.0
    %1642 = vmatpush1.msra.mxu0 0.0
    %1643 = vmatprep.subr.mxu0 0.0
    %1644 = vmatpush1.msra.mxu0 0.0
    %1645 = vmatprep.subr.mxu0 0.0
    %1646 = vmatpush1.msra.mxu0 0.0
    %1647 = vmatprep.subr.mxu0 0.0
    %1648 = vmatpush1.msra.mxu0 0.0
    %1649 = vmatprep.subr.mxu0 0.0
    %1650 = vmatpush1.msra.mxu0 0.0
    %1651 = vmatprep.subr.mxu0 0.0
    %1652 = vmatpush1.msra.mxu0 0.0
    %1653 = vmatprep.subr.mxu0 0.0
    %1654 = vmatpush1.msra.mxu0 0.0
    %1655 = vmatprep.subr.mxu0 0.0
    %1656 = vmatpush1.msra.mxu0 0.0
    %1657 = vmatprep.subr.mxu0 0.0
    %1658 = vmatpush1.msra.mxu0 0.0
    %1659 = vmatprep.subr.mxu0 0.0
    %1660 = vmatpush1.msra.mxu0 0.0
    %1661 = vmatprep.subr.mxu0 0.0
    %1662 = vmatpush1.msra.mxu0 0.0
    %1663 = vmatprep.subr.mxu0 0.0
    %1664 = vmatpush1.msra.mxu0 0.0
    %1665 = vmatprep.subr.mxu0 0.0
    %1666 = vmatpush1.msra.mxu0 0.0
    %1667 = vmatprep.subr.mxu0 0.0
    %1668 = vmatpush1.msra.mxu0 0.0
    %1669 = vmatprep.subr.mxu0 0.0
    %1670 = vmatpush1.msra.mxu0 0.0
    %1671 = vmatprep.subr.mxu0 0.0
    %1672 = vmatpush1.msra.mxu0 0.0
    %1673 = vmatprep.subr.mxu0 0.0
    %1674 = vmatpush1.msra.mxu0 0.0
    %1675 = vmatprep.subr.mxu0 0.0
    %1676 = vmatpush1.msra.mxu0 0.0
    %1677 = vmatprep.mubr.f32.mxu0 0.0
    %1678 = vmatmul.mubr.f32.gmra.mrb[0].mxu0 %v1611
    %v1679 = vpop.f32.mrb[0].mxu0
    %v1680 = vadd.f32 0.0, %v1679
    %v1681 = vpop.f32.mrb[0].mxu0
    %1682 = vdwg.mxu0
    %v1684 = vrot.slane %v1680, 2
    %v1686 = vadd.f32 %v1053, %v1684
    %v1687 = vtanh.pop %v1686
    %v1689 = vrot.slane %v1687, 6
    %v1690 = vsel %vm1064, %v1689, 0
    %1692 = vmatprep.subr.mxu0 0.0
    %1693 = vmatpush1.msra.mxu0 %v1056
    %1694 = vmatprep.subr.mxu0 0.0
    %1695 = vmatpush1.msra.mxu0 %v1057
    %1696 = vmatprep.subr.mxu0 0.0
    %1697 = vmatpush1.msra.mxu0 %v1058
    %1698 = vmatprep.subr.mxu0 0.0
    %1699 = vmatpush1.msra.mxu0 %v1059
    %1700 = vmatprep.subr.mxu0 0.0
    %1701 = vmatpush1.msra.mxu0 %v1060
    %1702 = vmatprep.subr.mxu0 0.0
    %1703 = vmatpush1.msra.mxu0 %v1061
    %1704 = vmatprep.subr.mxu0 0.0
    %1705 = vmatpush1.msra.mxu0 %v1062
    %1706 = vmatprep.subr.mxu0 0.0
    %1707 = vmatpush1.msra.mxu0 %v1063
    %1708 = vmatprep.subr.mxu0 0.0
    %1709 = vmatpush1.msra.mxu0 0.0
    %1710 = vmatprep.subr.mxu0 0.0
    %1711 = vmatpush1.msra.mxu0 0.0
    %1712 = vmatprep.subr.mxu0 0.0
    %1713 = vmatpush1.msra.mxu0 0.0
    %1714 = vmatprep.subr.mxu0 0.0
    %1715 = vmatpush1.msra.mxu0 0.0
    %1716 = vmatprep.subr.mxu0 0.0
    %1717 = vmatpush1.msra.mxu0 0.0
    %1718 = vmatprep.subr.mxu0 0.0
    %1719 = vmatpush1.msra.mxu0 0.0
    %1720 = vmatprep.subr.mxu0 0.0
    %1721 = vmatpush1.msra.mxu0 0.0
    %1722 = vmatprep.subr.mxu0 0.0
    %1723 = vmatpush1.msra.mxu0 0.0
    %1724 = vmatprep.subr.mxu0 0.0
    %1725 = vmatpush1.msra.mxu0 0.0
    %1726 = vmatprep.subr.mxu0 0.0
    %1727 = vmatpush1.msra.mxu0 0.0
    %1728 = vmatprep.subr.mxu0 0.0
    %1729 = vmatpush1.msra.mxu0 0.0
    %1730 = vmatprep.subr.mxu0 0.0
    %1731 = vmatpush1.msra.mxu0 0.0
    %1732 = vmatprep.subr.mxu0 0.0
    %1733 = vmatpush1.msra.mxu0 0.0
    %1734 = vmatprep.subr.mxu0 0.0
    %1735 = vmatpush1.msra.mxu0 0.0
    %1736 = vmatprep.subr.mxu0 0.0
    %1737 = vmatpush1.msra.mxu0 0.0
    %1738 = vmatprep.subr.mxu0 0.0
    %1739 = vmatpush1.msra.mxu0 0.0
    %1740 = vmatprep.subr.mxu0 0.0
    %1741 = vmatpush1.msra.mxu0 0.0
    %1742 = vmatprep.subr.mxu0 0.0
    %1743 = vmatpush1.msra.mxu0 0.0
    %1744 = vmatprep.subr.mxu0 0.0
    %1745 = vmatpush1.msra.mxu0 0.0
    %1746 = vmatprep.subr.mxu0 0.0
    %1747 = vmatpush1.msra.mxu0 0.0
    %1748 = vmatprep.subr.mxu0 0.0
    %1749 = vmatpush1.msra.mxu0 0.0
    %1750 = vmatprep.subr.mxu0 0.0
    %1751 = vmatpush1.msra.mxu0 0.0
    %1752 = vmatprep.subr.mxu0 0.0
    %1753 = vmatpush1.msra.mxu0 0.0
    %1754 = vmatprep.subr.mxu0 0.0
    %1755 = vmatpush1.msra.mxu0 0.0
    %1756 = vmatprep.mubr.f32.mxu0 0.0
    %1757 = vmatmul.mubr.f32.gmra.mrb[0].mxu0 %v1690
    %v1758 = vpop.f32.mrb[0].mxu0
    %v1759 = vadd.f32 0.0, %v1758
    %v1760 = vpop.f32.mrb[0].mxu0
    %1761 = vdwg.mxu0
    %v1762 = vadd.f32 %v1054, %v1759
    %v1763 = vtanh.pop %v1762
    %v1765 = vsel %vm1064, %v1763, 0
    %1767 = vmatprep.subr.mxu0 0.0
    %1768 = vmatpush1.msra.mxu0 %v1056
    %1769 = vmatprep.subr.mxu0 0.0
    %1770 = vmatpush1.msra.mxu0 %v1057
    %1771 = vmatprep.subr.mxu0 0.0
    %1772 = vmatpush1.msra.mxu0 %v1058
    %1773 = vmatprep.subr.mxu0 0.0
    %1774 = vmatpush1.msra.mxu0 %v1059
    %1775 = vmatprep.subr.mxu0 0.0
    %1776 = vmatpush1.msra.mxu0 %v1060
    %1777 = vmatprep.subr.mxu0 0.0
    %1778 = vmatpush1.msra.mxu0 %v1061
    %1779 = vmatprep.subr.mxu0 0.0
    %1780 = vmatpush1.msra.mxu0 %v1062
    %1781 = vmatprep.subr.mxu0 0.0
    %1782 = vmatpush1.msra.mxu0 %v1063
    %1783 = vmatprep.subr.mxu0 0.0
    %1784 = vmatpush1.msra.mxu0 0.0
    %1785 = vmatprep.subr.mxu0 0.0
    %1786 = vmatpush1.msra.mxu0 0.0
    %1787 = vmatprep.subr.mxu0 0.0
    %1788 = vmatpush1.msra.mxu0 0.0
    %1789 = vmatprep.subr.mxu0 0.0
    %1790 = vmatpush1.msra.mxu0 0.0
    %1791 = vmatprep.subr.mxu0 0.0
    %1792 = vmatpush1.msra.mxu0 0.0
    %1793 = vmatprep.subr.mxu0 0.0
    %1794 = vmatpush1.msra.mxu0 0.0
    %1795 = vmatprep.subr.mxu0 0.0
    %1796 = vmatpush1.msra.mxu0 0.0
    %1797 = vmatprep.subr.mxu0 0.0
    %1798 = vmatpush1.msra.mxu0 0.0
    %1799 = vmatprep.subr.mxu0 0.0
    %1800 = vmatpush1.msra.mxu0 0.0
    %1801 = vmatprep.subr.mxu0 0.0
    %1802 = vmatpush1.msra.mxu0 0.0
    %1803 = vmatprep.subr.mxu0 0.0
    %1804 = vmatpush1.msra.mxu0 0.0
    %1805 = vmatprep.subr.mxu0 0.0
    %1806 = vmatpush1.msra.mxu0 0.0
    %1807 = vmatprep.subr.mxu0 0.0
    %1808 = vmatpush1.msra.mxu0 0.0
    %1809 = vmatprep.subr.mxu0 0.0
    %1810 = vmatpush1.msra.mxu0 0.0
    %1811 = vmatprep.subr.mxu0 0.0
    %1812 = vmatpush1.msra.mxu0 0.0
    %1813 = vmatprep.subr.mxu0 0.0
    %1814 = vmatpush1.msra.mxu0 0.0
    %1815 = vmatprep.subr.mxu0 0.0
    %1816 = vmatpush1.msra.mxu0 0.0
    %1817 = vmatprep.subr.mxu0 0.0
    %1818 = vmatpush1.msra.mxu0 0.0
    %1819 = vmatprep.subr.mxu0 0.0
    %1820 = vmatpush1.msra.mxu0 0.0
    %1821 = vmatprep.subr.mxu0 0.0
    %1822 = vmatpush1.msra.mxu0 0.0
    %1823 = vmatprep.subr.mxu0 0.0
    %1824 = vmatpush1.msra.mxu0 0.0
    %1825 = vmatprep.subr.mxu0 0.0
    %1826 = vmatpush1.msra.mxu0 0.0
    %1827 = vmatprep.subr.mxu0 0.0
    %1828 = vmatpush1.msra.mxu0 0.0
    %1829 = vmatprep.subr.mxu0 0.0
    %1830 = vmatpush1.msra.mxu0 0.0
    %1831 = vmatprep.mubr.f32.mxu0 0.0
    %1832 = vmatmul.mubr.f32.gmra.mrb[0].mxu0 %v1765
    %v1833 = vpop.f32.mrb[0].mxu0
    %v1834 = vadd.f32 0.0, %v1833
    %v1835 = vpop.f32.mrb[0].mxu0
    %1836 = vdwg.mxu0
    %v1838 = vrot.slane %v1834, 6
    %v1840 = vadd.f32 %v1054, %v1838
    %v1841 = vtanh.pop %v1840
    %v1843 = vrot.slane %v1841, 2
    %v1844 = vsel %vm1064, %v1843, 0
    %1846 = vmatprep.subr.mxu0 0.0
    %1847 = vmatpush1.msra.mxu0 %v1056
    %1848 = vmatprep.subr.mxu0 0.0
    %1849 = vmatpush1.msra.mxu0 %v1057
    %1850 = vmatprep.subr.mxu0 0.0
    %1851 = vmatpush1.msra.mxu0 %v1058
    %1852 = vmatprep.subr.mxu0 0.0
    %1853 = vmatpush1.msra.mxu0 %v1059
    %1854 = vmatprep.subr.mxu0 0.0
    %1855 = vmatpush1.msra.mxu0 %v1060
    %1856 = vmatprep.subr.mxu0 0.0
    %1857 = vmatpush1.msra.mxu0 %v1061
    %1858 = vmatprep.subr.mxu0 0.0
    %1859 = vmatpush1.msra.mxu0 %v1062
    %1860 = vmatprep.subr.mxu0 0.0
    %1861 = vmatpush1.msra.mxu0 %v1063
    %1862 = vmatprep.subr.mxu0 0.0
    %1863 = vmatpush1.msra.mxu0 0.0
    %1864 = vmatprep.subr.mxu0 0.0
    %1865 = vmatpush1.msra.mxu0 0.0
    %1866 = vmatprep.subr.mxu0 0.0
    %1867 = vmatpush1.msra.mxu0 0.0
    %1868 = vmatprep.subr.mxu0 0.0
    %1869 = vmatpush1.msra.mxu0 0.0
    %1870 = vmatprep.subr.mxu0 0.0
    %1871 = vmatpush1.msra.mxu0 0.0
    %1872 = vmatprep.subr.mxu0 0.0
    %1873 = vmatpush1.msra.mxu0 0.0
    %1874 = vmatprep.subr.mxu0 0.0
    %1875 = vmatpush1.msra.mxu0 0.0
    %1876 = vmatprep.subr.mxu0 0.0
    %1877 = vmatpush1.msra.mxu0 0.0
    %1878 = vmatprep.subr.mxu0 0.0
    %1879 = vmatpush1.msra.mxu0 0.0
    %1880 = vmatprep.subr.mxu0 0.0
    %1881 = vmatpush1.msra.mxu0 0.0
    %1882 = vmatprep.subr.mxu0 0.0
    %1883 = vmatpush1.msra.mxu0 0.0
    %1884 = vmatprep.subr.mxu0 0.0
    %1885 = vmatpush1.msra.mxu0 0.0
    %1886 = vmatprep.subr.mxu0 0.0
    %1887 = vmatpush1.msra.mxu0 0.0
    %1888 = vmatprep.subr.mxu0 0.0
    %1889 = vmatpush1.msra.mxu0 0.0
    %1890 = vmatprep.subr.mxu0 0.0
    %1891 = vmatpush1.msra.mxu0 0.0
    %1892 = vmatprep.subr.mxu0 0.0
    %1893 = vmatpush1.msra.mxu0 0.0
    %1894 = vmatprep.subr.mxu0 0.0
    %1895 = vmatpush1.msra.mxu0 0.0
    %1896 = vmatprep.subr.mxu0 0.0
    %1897 = vmatpush1.msra.mxu0 0.0
    %1898 = vmatprep.subr.mxu0 0.0
    %1899 = vmatpush1.msra.mxu0 0.0
    %1900 = vmatprep.subr.mxu0 0.0
    %1901 = vmatpush1.msra.mxu0 0.0
    %1902 = vmatprep.subr.mxu0 0.0
    %1903 = vmatpush1.msra.mxu0 0.0
    %1904 = vmatprep.subr.mxu0 0.0
    %1905 = vmatpush1.msra.mxu0 0.0
    %1906 = vmatprep.subr.mxu0 0.0
    %1907 = vmatpush1.msra.mxu0 0.0
    %1908 = vmatprep.subr.mxu0 0.0
    %1909 = vmatpush1.msra.mxu0 0.0
    %1910 = vmatprep.mubr.f32.mxu0 0.0
    %1911 = vmatmul.mubr.f32.gmra.mrb[0].mxu0 %v1844
    %v1912 = vpop.f32.mrb[0].mxu0
    %v1913 = vadd.f32 0.0, %v1912
    %v1914 = vpop.f32.mrb[0].mxu0
    %1915 = vdwg.mxu0
    %v1917 = vrot.slane %v1913, 4
    %v1919 = vadd.f32 %v1054, %v1917
    %v1920 = vtanh.pop %v1919
    %v1922 = vrot.slane %v1920, 4
    %v1923 = vsel %vm1064, %v1922, 0
    %1925 = vmatprep.subr.mxu0 0.0
    %1926 = vmatpush1.msra.mxu0 %v1056
    %1927 = vmatprep.subr.mxu0 0.0
    %1928 = vmatpush1.msra.mxu0 %v1057
    %1929 = vmatprep.subr.mxu0 0.0
    %1930 = vmatpush1.msra.mxu0 %v1058
    %1931 = vmatprep.subr.mxu0 0.0
    %1932 = vmatpush1.msra.mxu0 %v1059
    %1933 = vmatprep.subr.mxu0 0.0
    %1934 = vmatpush1.msra.mxu0 %v1060
    %1935 = vmatprep.subr.mxu0 0.0
    %1936 = vmatpush1.msra.mxu0 %v1061
    %1937 = vmatprep.subr.mxu0 0.0
    %1938 = vmatpush1.msra.mxu0 %v1062
    %1939 = vmatprep.subr.mxu0 0.0
    %1940 = vmatpush1.msra.mxu0 %v1063
    %1941 = vmatprep.subr.mxu0 0.0
    %1942 = vmatpush1.msra.mxu0 0.0
    %1943 = vmatprep.subr.mxu0 0.0
    %1944 = vmatpush1.msra.mxu0 0.0
    %1945 = vmatprep.subr.mxu0 0.0
    %1946 = vmatpush1.msra.mxu0 0.0
    %1947 = vmatprep.subr.mxu0 0.0
    %1948 = vmatpush1.msra.mxu0 0.0
    %1949 = vmatprep.subr.mxu0 0.0
    %1950 = vmatpush1.msra.mxu0 0.0
    %1951 = vmatprep.subr.mxu0 0.0
    %1952 = vmatpush1.msra.mxu0 0.0
    %1953 = vmatprep.subr.mxu0 0.0
    %1954 = vmatpush1.msra.mxu0 0.0
    %1955 = vmatprep.subr.mxu0 0.0
    %1956 = vmatpush1.msra.mxu0 0.0
    %1957 = vmatprep.subr.mxu0 0.0
    %1958 = vmatpush1.msra.mxu0 0.0
    %1959 = vmatprep.subr.mxu0 0.0
    %1960 = vmatpush1.msra.mxu0 0.0
    %1961 = vmatprep.subr.mxu0 0.0
    %1962 = vmatpush1.msra.mxu0 0.0
    %1963 = vmatprep.subr.mxu0 0.0
    %1964 = vmatpush1.msra.mxu0 0.0
    %1965 = vmatprep.subr.mxu0 0.0
    %1966 = vmatpush1.msra.mxu0 0.0
    %1967 = vmatprep.subr.mxu0 0.0
    %1968 = vmatpush1.msra.mxu0 0.0
    %1969 = vmatprep.subr.mxu0 0.0
    %1970 = vmatpush1.msra.mxu0 0.0
    %1971 = vmatprep.subr.mxu0 0.0
    %1972 = vmatpush1.msra.mxu0 0.0
    %1973 = vmatprep.subr.mxu0 0.0
    %1974 = vmatpush1.msra.mxu0 0.0
    %1975 = vmatprep.subr.mxu0 0.0
    %1976 = vmatpush1.msra.mxu0 0.0
    %1977 = vmatprep.subr.mxu0 0.0
    %1978 = vmatpush1.msra.mxu0 0.0
    %1979 = vmatprep.subr.mxu0 0.0
    %1980 = vmatpush1.msra.mxu0 0.0
    %1981 = vmatprep.subr.mxu0 0.0
    %1982 = vmatpush1.msra.mxu0 0.0
    %1983 = vmatprep.subr.mxu0 0.0
    %1984 = vmatpush1.msra.mxu0 0.0
    %1985 = vmatprep.subr.mxu0 0.0
    %1986 = vmatpush1.msra.mxu0 0.0
    %1987 = vmatprep.subr.mxu0 0.0
    %1988 = vmatpush1.msra.mxu0 0.0
    %1989 = vmatprep.mubr.f32.mxu0 0.0
    %1990 = vmatmul.mubr.f32.gmra.mrb[0].mxu0 %v1923
    %v1991 = vpop.f32.mrb[0].mxu0
    %v1992 = vadd.f32 0.0, %v1991
    %v1993 = vpop.f32.mrb[0].mxu0
    %1994 = vdwg.mxu0
    %v1996 = vrot.slane %v1992, 2
    %v1998 = vadd.f32 %v1054, %v1996
    %v1999 = vtanh.pop %v1998
    %v2001 = vrot.slane %v1999, 6
    %v2002 = vsel %vm1064, %v2001, 0
    %2004 = vmatprep.subr.mxu0 0.0
    %2005 = vmatpush1.msra.mxu0 %v1056
    %2006 = vmatprep.subr.mxu0 0.0
    %2007 = vmatpush1.msra.mxu0 %v1057
    %2008 = vmatprep.subr.mxu0 0.0
    %2009 = vmatpush1.msra.mxu0 %v1058
    %2010 = vmatprep.subr.mxu0 0.0
    %2011 = vmatpush1.msra.mxu0 %v1059
    %2012 = vmatprep.subr.mxu0 0.0
    %2013 = vmatpush1.msra.mxu0 %v1060
    %2014 = vmatprep.subr.mxu0 0.0
    %2015 = vmatpush1.msra.mxu0 %v1061
    %2016 = vmatprep.subr.mxu0 0.0
    %2017 = vmatpush1.msra.mxu0 %v1062
    %2018 = vmatprep.subr.mxu0 0.0
    %2019 = vmatpush1.msra.mxu0 %v1063
    %2020 = vmatprep.subr.mxu0 0.0
    %2021 = vmatpush1.msra.mxu0 0.0
    %2022 = vmatprep.subr.mxu0 0.0
    %2023 = vmatpush1.msra.mxu0 0.0
    %2024 = vmatprep.subr.mxu0 0.0
    %2025 = vmatpush1.msra.mxu0 0.0
    %2026 = vmatprep.subr.mxu0 0.0
    %2027 = vmatpush1.msra.mxu0 0.0
    %2028 = vmatprep.subr.mxu0 0.0
    %2029 = vmatpush1.msra.mxu0 0.0
    %2030 = vmatprep.subr.mxu0 0.0
    %2031 = vmatpush1.msra.mxu0 0.0
    %2032 = vmatprep.subr.mxu0 0.0
    %2033 = vmatpush1.msra.mxu0 0.0
    %2034 = vmatprep.subr.mxu0 0.0
    %2035 = vmatpush1.msra.mxu0 0.0
    %2036 = vmatprep.subr.mxu0 0.0
    %2037 = vmatpush1.msra.mxu0 0.0
    %2038 = vmatprep.subr.mxu0 0.0
    %2039 = vmatpush1.msra.mxu0 0.0
    %2040 = vmatprep.subr.mxu0 0.0
    %2041 = vmatpush1.msra.mxu0 0.0
    %2042 = vmatprep.subr.mxu0 0.0
    %2043 = vmatpush1.msra.mxu0 0.0
    %2044 = vmatprep.subr.mxu0 0.0
    %2045 = vmatpush1.msra.mxu0 0.0
    %2046 = vmatprep.subr.mxu0 0.0
    %2047 = vmatpush1.msra.mxu0 0.0
    %2048 = vmatprep.subr.mxu0 0.0
    %2049 = vmatpush1.msra.mxu0 0.0
    %2050 = vmatprep.subr.mxu0 0.0
    %2051 = vmatpush1.msra.mxu0 0.0
    %2052 = vmatprep.subr.mxu0 0.0
    %2053 = vmatpush1.msra.mxu0 0.0
    %2054 = vmatprep.subr.mxu0 0.0
    %2055 = vmatpush1.msra.mxu0 0.0
    %2056 = vmatprep.subr.mxu0 0.0
    %2057 = vmatpush1.msra.mxu0 0.0
    %2058 = vmatprep.subr.mxu0 0.0
    %2059 = vmatpush1.msra.mxu0 0.0
    %2060 = vmatprep.subr.mxu0 0.0
    %2061 = vmatpush1.msra.mxu0 0.0
    %2062 = vmatprep.subr.mxu0 0.0
    %2063 = vmatpush1.msra.mxu0 0.0
    %2064 = vmatprep.subr.mxu0 0.0
    %2065 = vmatpush1.msra.mxu0 0.0
    %2066 = vmatprep.subr.mxu0 0.0
    %2067 = vmatpush1.msra.mxu0 0.0
    %2068 = vmatprep.mubr.f32.mxu0 0.0
    %2069 = vmatmul.mubr.f32.gmra.mrb[0].mxu0 %v2002
    %v2070 = vpop.f32.mrb[0].mxu0
    %v2071 = vadd.f32 0.0, %v2070
    %v2072 = vpop.f32.mrb[0].mxu0
    %2073 = vdwg.mxu0
    %v2074 = vadd.f32 %v1055, %v2071
    %v2075 = vtanh.pop %v2074
    %v2077 = vsel %vm1064, %v2075, 0
    %2079 = vmatprep.subr.mxu0 0.0
    %2080 = vmatpush1.msra.mxu0 %v1056
    %2081 = vmatprep.subr.mxu0 0.0
    %2082 = vmatpush1.msra.mxu0 %v1057
    %2083 = vmatprep.subr.mxu0 0.0
    %2084 = vmatpush1.msra.mxu0 %v1058
    %2085 = vmatprep.subr.mxu0 0.0
    %2086 = vmatpush1.msra.mxu0 %v1059
    %2087 = vmatprep.subr.mxu0 0.0
    %2088 = vmatpush1.msra.mxu0 %v1060
    %2089 = vmatprep.subr.mxu0 0.0
    %2090 = vmatpush1.msra.mxu0 %v1061
    %2091 = vmatprep.subr.mxu0 0.0
    %2092 = vmatpush1.msra.mxu0 %v1062
    %2093 = vmatprep.subr.mxu0 0.0
    %2094 = vmatpush1.msra.mxu0 %v1063
    %2095 = vmatprep.subr.mxu0 0.0
    %2096 = vmatpush1.msra.mxu0 0.0
    %2097 = vmatprep.subr.mxu0 0.0
    %2098 = vmatpush1.msra.mxu0 0.0
    %2099 = vmatprep.subr.mxu0 0.0
    %2100 = vmatpush1.msra.mxu0 0.0
    %2101 = vmatprep.subr.mxu0 0.0
    %2102 = vmatpush1.msra.mxu0 0.0
    %2103 = vmatprep.subr.mxu0 0.0
    %2104 = vmatpush1.msra.mxu0 0.0
    %2105 = vmatprep.subr.mxu0 0.0
    %2106 = vmatpush1.msra.mxu0 0.0
    %2107 = vmatprep.subr.mxu0 0.0
    %2108 = vmatpush1.msra.mxu0 0.0
    %2109 = vmatprep.subr.mxu0 0.0
    %2110 = vmatpush1.msra.mxu0 0.0
    %2111 = vmatprep.subr.mxu0 0.0
    %2112 = vmatpush1.msra.mxu0 0.0
    %2113 = vmatprep.subr.mxu0 0.0
    %2114 = vmatpush1.msra.mxu0 0.0
    %2115 = vmatprep.subr.mxu0 0.0
    %2116 = vmatpush1.msra.mxu0 0.0
    %2117 = vmatprep.subr.mxu0 0.0
    %2118 = vmatpush1.msra.mxu0 0.0
    %2119 = vmatprep.subr.mxu0 0.0
    %2120 = vmatpush1.msra.mxu0 0.0
    %2121 = vmatprep.subr.mxu0 0.0
    %2122 = vmatpush1.msra.mxu0 0.0
    %2123 = vmatprep.subr.mxu0 0.0
    %2124 = vmatpush1.msra.mxu0 0.0
    %2125 = vmatprep.subr.mxu0 0.0
    %2126 = vmatpush1.msra.mxu0 0.0
    %2127 = vmatprep.subr.mxu0 0.0
    %2128 = vmatpush1.msra.mxu0 0.0
    %2129 = vmatprep.subr.mxu0 0.0
    %2130 = vmatpush1.msra.mxu0 0.0
    %2131 = vmatprep.subr.mxu0 0.0
    %2132 = vmatpush1.msra.mxu0 0.0
    %2133 = vmatprep.subr.mxu0 0.0
    %2134 = vmatpush1.msra.mxu0 0.0
    %2135 = vmatprep.subr.mxu0 0.0
    %2136 = vmatpush1.msra.mxu0 0.0
    %2137 = vmatprep.subr.mxu0 0.0
    %2138 = vmatpush1.msra.mxu0 0.0
    %2139 = vmatprep.subr.mxu0 0.0
    %2140 = vmatpush1.msra.mxu0 0.0
    %2141 = vmatprep.subr.mxu0 0.0
    %2142 = vmatpush1.msra.mxu0 0.0
    %2143 = vmatprep.mubr.f32.mxu0 0.0
    %2144 = vmatmul.mubr.f32.gmra.mrb[0].mxu0 %v2077
    %v2145 = vpop.f32.mrb[0].mxu0
    %v2146 = vadd.f32 0.0, %v2145
    %v2147 = vpop.f32.mrb[0].mxu0
    %2148 = vdwg.mxu0
    %v2150 = vrot.slane %v2146, 6
    %v2152 = vadd.f32 %v1055, %v2150
    %v2153 = vtanh.pop %v2152
    %v2155 = vrot.slane %v2153, 2
    %v2156 = vsel %vm1064, %v2155, 0
    %2158 = vmatprep.subr.mxu0 0.0
    %2159 = vmatpush1.msra.mxu0 %v1056
    %2160 = vmatprep.subr.mxu0 0.0
    %2161 = vmatpush1.msra.mxu0 %v1057
    %2162 = vmatprep.subr.mxu0 0.0
    %2163 = vmatpush1.msra.mxu0 %v1058
    %2164 = vmatprep.subr.mxu0 0.0
    %2165 = vmatpush1.msra.mxu0 %v1059
    %2166 = vmatprep.subr.mxu0 0.0
    %2167 = vmatpush1.msra.mxu0 %v1060
    %2168 = vmatprep.subr.mxu0 0.0
    %2169 = vmatpush1.msra.mxu0 %v1061
    %2170 = vmatprep.subr.mxu0 0.0
    %2171 = vmatpush1.msra.mxu0 %v1062
    %2172 = vmatprep.subr.mxu0 0.0
    %2173 = vmatpush1.msra.mxu0 %v1063
    %2174 = vmatprep.subr.mxu0 0.0
    %2175 = vmatpush1.msra.mxu0 0.0
    %2176 = vmatprep.subr.mxu0 0.0
    %2177 = vmatpush1.msra.mxu0 0.0
    %2178 = vmatprep.subr.mxu0 0.0
    %2179 = vmatpush1.msra.mxu0 0.0
    %2180 = vmatprep.subr.mxu0 0.0
    %2181 = vmatpush1.msra.mxu0 0.0
    %2182 = vmatprep.subr.mxu0 0.0
    %2183 = vmatpush1.msra.mxu0 0.0
    %2184 = vmatprep.subr.mxu0 0.0
    %2185 = vmatpush1.msra.mxu0 0.0
    %2186 = vmatprep.subr.mxu0 0.0
    %2187 = vmatpush1.msra.mxu0 0.0
    %2188 = vmatprep.subr.mxu0 0.0
    %2189 = vmatpush1.msra.mxu0 0.0
    %2190 = vmatprep.subr.mxu0 0.0
    %2191 = vmatpush1.msra.mxu0 0.0
    %2192 = vmatprep.subr.mxu0 0.0
    %2193 = vmatpush1.msra.mxu0 0.0
    %2194 = vmatprep.subr.mxu0 0.0
    %2195 = vmatpush1.msra.mxu0 0.0
    %2196 = vmatprep.subr.mxu0 0.0
    %2197 = vmatpush1.msra.mxu0 0.0
    %2198 = vmatprep.subr.mxu0 0.0
    %2199 = vmatpush1.msra.mxu0 0.0
    %2200 = vmatprep.subr.mxu0 0.0
    %2201 = vmatpush1.msra.mxu0 0.0
    %2202 = vmatprep.subr.mxu0 0.0
    %2203 = vmatpush1.msra.mxu0 0.0
    %2204 = vmatprep.subr.mxu0 0.0
    %2205 = vmatpush1.msra.mxu0 0.0
    %2206 = vmatprep.subr.mxu0 0.0
    %2207 = vmatpush1.msra.mxu0 0.0
    %2208 = vmatprep.subr.mxu0 0.0
    %2209 = vmatpush1.msra.mxu0 0.0
    %2210 = vmatprep.subr.mxu0 0.0
    %2211 = vmatpush1.msra.mxu0 0.0
    %2212 = vmatprep.subr.mxu0 0.0
    %2213 = vmatpush1.msra.mxu0 0.0
    %2214 = vmatprep.subr.mxu0 0.0
    %2215 = vmatpush1.msra.mxu0 0.0
    %2216 = vmatprep.subr.mxu0 0.0
    %2217 = vmatpush1.msra.mxu0 0.0
    %2218 = vmatprep.subr.mxu0 0.0
    %2219 = vmatpush1.msra.mxu0 0.0
    %2220 = vmatprep.subr.mxu0 0.0
    %2221 = vmatpush1.msra.mxu0 0.0
    %2222 = vmatprep.mubr.f32.mxu0 0.0
    %2223 = vmatmul.mubr.f32.gmra.mrb[0].mxu0 %v2156
    %v2224 = vpop.f32.mrb[0].mxu0
    %v2225 = vadd.f32 0.0, %v2224
    %v2226 = vpop.f32.mrb[0].mxu0
    %2227 = vdwg.mxu0
    %v2229 = vrot.slane %v2225, 4
    %v2231 = vadd.f32 %v1055, %v2229
    %v2232 = vtanh.pop %v2231
    %v2234 = vrot.slane %v2232, 4
    %v2235 = vsel %vm1064, %v2234, 0
    %2237 = vmatprep.subr.mxu0 0.0
    %2238 = vmatpush1.msra.mxu0 %v1056
    %2239 = vmatprep.subr.mxu0 0.0
    %2240 = vmatpush1.msra.mxu0 %v1057
    %2241 = vmatprep.subr.mxu0 0.0
    %2242 = vmatpush1.msra.mxu0 %v1058
    %2243 = vmatprep.subr.mxu0 0.0
    %2244 = vmatpush1.msra.mxu0 %v1059
    %2245 = vmatprep.subr.mxu0 0.0
    %2246 = vmatpush1.msra.mxu0 %v1060
    %2247 = vmatprep.subr.mxu0 0.0
    %2248 = vmatpush1.msra.mxu0 %v1061
    %2249 = vmatprep.subr.mxu0 0.0
    %2250 = vmatpush1.msra.mxu0 %v1062
    %2251 = vmatprep.subr.mxu0 0.0
    %2252 = vmatpush1.msra.mxu0 %v1063
    %2253 = vmatprep.subr.mxu0 0.0
    %2254 = vmatpush1.msra.mxu0 0.0
    %2255 = vmatprep.subr.mxu0 0.0
    %2256 = vmatpush1.msra.mxu0 0.0
    %2257 = vmatprep.subr.mxu0 0.0
    %2258 = vmatpush1.msra.mxu0 0.0
    %2259 = vmatprep.subr.mxu0 0.0
    %2260 = vmatpush1.msra.mxu0 0.0
    %2261 = vmatprep.subr.mxu0 0.0
    %2262 = vmatpush1.msra.mxu0 0.0
    %2263 = vmatprep.subr.mxu0 0.0
    %2264 = vmatpush1.msra.mxu0 0.0
    %2265 = vmatprep.subr.mxu0 0.0
    %2266 = vmatpush1.msra.mxu0 0.0
    %2267 = vmatprep.subr.mxu0 0.0
    %2268 = vmatpush1.msra.mxu0 0.0
    %2269 = vmatprep.subr.mxu0 0.0
    %2270 = vmatpush1.msra.mxu0 0.0
    %2271 = vmatprep.subr.mxu0 0.0
    %2272 = vmatpush1.msra.mxu0 0.0
    %2273 = vmatprep.subr.mxu0 0.0
    %2274 = vmatpush1.msra.mxu0 0.0
    %2275 = vmatprep.subr.mxu0 0.0
    %2276 = vmatpush1.msra.mxu0 0.0
    %2277 = vmatprep.subr.mxu0 0.0
    %2278 = vmatpush1.msra.mxu0 0.0
    %2279 = vmatprep.subr.mxu0 0.0
    %2280 = vmatpush1.msra.mxu0 0.0
    %2281 = vmatprep.subr.mxu0 0.0
    %2282 = vmatpush1.msra.mxu0 0.0
    %2283 = vmatprep.subr.mxu0 0.0
    %2284 = vmatpush1.msra.mxu0 0.0
    %2285 = vmatprep.subr.mxu0 0.0
    %2286 = vmatpush1.msra.mxu0 0.0
    %2287 = vmatprep.subr.mxu0 0.0
    %2288 = vmatpush1.msra.mxu0 0.0
    %2289 = vmatprep.subr.mxu0 0.0
    %2290 = vmatpush1.msra.mxu0 0.0
    %2291 = vmatprep.subr.mxu0 0.0
    %2292 = vmatpush1.msra.mxu0 0.0
    %2293 = vmatprep.subr.mxu0 0.0
    %2294 = vmatpush1.msra.mxu0 0.0
    %2295 = vmatprep.subr.mxu0 0.0
    %2296 = vmatpush1.msra.mxu0 0.0
    %2297 = vmatprep.subr.mxu0 0.0
    %2298 = vmatpush1.msra.mxu0 0.0
    %2299 = vmatprep.subr.mxu0 0.0
    %2300 = vmatpush1.msra.mxu0 0.0
    %2301 = vmatprep.mubr.f32.mxu0 0.0
    %2302 = vmatmul.mubr.f32.gmra.mrb[0].mxu0 %v2235
    %v2303 = vpop.f32.mrb[0].mxu0
    %v2304 = vadd.f32 0.0, %v2303
    %v2305 = vpop.f32.mrb[0].mxu0
    %2306 = vdwg.mxu0
    %v2308 = vrot.slane %v2304, 2
    %v2310 = vadd.f32 %v1055, %v2308
    %v2311 = vtanh.pop %v2310
    %v2313 = vrot.slane %v2311, 6
    %v2315 = vrot.slane %v2311, 5
    %2316 = vrot.lane.b32.xlu0 %v2315, 96
    %v2317 = vpop.permute.xlu0 %2316
    %vm2319 = vcmask 1040384
    %v2320 = vsel %vm2319, %v2313, %v2317
    %v2321 = vrot.slane %v2311, 7
    %2323 = vrot.lane.b32.xlu0 %v2313, 96
    %v2324 = vpop.permute.xlu0 %2323
    %v2326 = vsel %vm2319, %v2321, %v2324
    %2328 = vrot.lane.b32.xlu0 %v2326, 32
    %v2329 = vpop.permute.xlu0 %2328
    %v2331 = vsel %vm339, %v2320, %v2329
    %v2332 = vld [vmem:[%s1 + $0x120] sm:$0xff]
    %v2333 = vld [vmem:[%s1 + $0x128] sm:$0xff]
    %v2334 = vld [vmem:[%s1 + $0x130] sm:$0xff]
    %v2335 = vld [vmem:[%s1 + $0x138] sm:$0xff]
    %v2336 = vld [vmem:[%s1 + $0x140] sm:$0xff]
    %v2337 = vld [vmem:[%s1 + $0x148] sm:$0xff]
    %v2338 = vld [vmem:[%s1 + $0x150] sm:$0xff]
    %v2339 = vld [vmem:[%s1 + $0x158] sm:$0xff]
    %v2340 = vld [vmem:[%s1 + $0x160] sm:$0x1]
    %v2341 = vlaneseq
    %v2342 = vshrl.u32 %v2341, 7
    %v2343 = vsub.s32 0, %v2342
    %v2344 = vrot.slane %v2340, %v2343
    %v2346 = vsel %vm1064, %v2331, 0
    %2348 = vmatprep.subr.mxu0 0.0
    %2349 = vmatpush1.msra.mxu0 %v2332
    %2350 = vmatprep.subr.mxu0 0.0
    %2351 = vmatpush1.msra.mxu0 %v2333
    %2352 = vmatprep.subr.mxu0 0.0
    %2353 = vmatpush1.msra.mxu0 %v2334
    %2354 = vmatprep.subr.mxu0 0.0
    %2355 = vmatpush1.msra.mxu0 %v2335
    %2356 = vmatprep.subr.mxu0 0.0
    %2357 = vmatpush1.msra.mxu0 %v2336
    %2358 = vmatprep.subr.mxu0 0.0
    %2359 = vmatpush1.msra.mxu0 %v2337
    %2360 = vmatprep.subr.mxu0 0.0
    %2361 = vmatpush1.msra.mxu0 %v2338
    %2362 = vmatprep.subr.mxu0 0.0
    %2363 = vmatpush1.msra.mxu0 %v2339
    %2364 = vmatprep.subr.mxu0 0.0
    %2365 = vmatpush1.msra.mxu0 0.0
    %2366 = vmatprep.subr.mxu0 0.0
    %2367 = vmatpush1.msra.mxu0 0.0
    %2368 = vmatprep.subr.mxu0 0.0
    %2369 = vmatpush1.msra.mxu0 0.0
    %2370 = vmatprep.subr.mxu0 0.0
    %2371 = vmatpush1.msra.mxu0 0.0
    %2372 = vmatprep.subr.mxu0 0.0
    %2373 = vmatpush1.msra.mxu0 0.0
    %2374 = vmatprep.subr.mxu0 0.0
    %2375 = vmatpush1.msra.mxu0 0.0
    %2376 = vmatprep.subr.mxu0 0.0
    %2377 = vmatpush1.msra.mxu0 0.0
    %2378 = vmatprep.subr.mxu0 0.0
    %2379 = vmatpush1.msra.mxu0 0.0
    %2380 = vmatprep.subr.mxu0 0.0
    %2381 = vmatpush1.msra.mxu0 0.0
    %2382 = vmatprep.subr.mxu0 0.0
    %2383 = vmatpush1.msra.mxu0 0.0
    %2384 = vmatprep.subr.mxu0 0.0
    %2385 = vmatpush1.msra.mxu0 0.0
    %2386 = vmatprep.subr.mxu0 0.0
    %2387 = vmatpush1.msra.mxu0 0.0
    %2388 = vmatprep.subr.mxu0 0.0
    %2389 = vmatpush1.msra.mxu0 0.0
    %2390 = vmatprep.subr.mxu0 0.0
    %2391 = vmatpush1.msra.mxu0 0.0
    %2392 = vmatprep.subr.mxu0 0.0
    %2393 = vmatpush1.msra.mxu0 0.0
    %2394 = vmatprep.subr.mxu0 0.0
    %2395 = vmatpush1.msra.mxu0 0.0
    %2396 = vmatprep.subr.mxu0 0.0
    %2397 = vmatpush1.msra.mxu0 0.0
    %2398 = vmatprep.subr.mxu0 0.0
    %2399 = vmatpush1.msra.mxu0 0.0
    %2400 = vmatprep.subr.mxu0 0.0
    %2401 = vmatpush1.msra.mxu0 0.0
    %2402 = vmatprep.subr.mxu0 0.0
    %2403 = vmatpush1.msra.mxu0 0.0
    %2404 = vmatprep.subr.mxu0 0.0
    %2405 = vmatpush1.msra.mxu0 0.0
    %2406 = vmatprep.subr.mxu0 0.0
    %2407 = vmatpush1.msra.mxu0 0.0
    %2408 = vmatprep.subr.mxu0 0.0
    %2409 = vmatpush1.msra.mxu0 0.0
    %2410 = vmatprep.subr.mxu0 0.0
    %2411 = vmatpush1.msra.mxu0 0.0
    %2412 = vmatprep.mubr.f32.mxu0 0.0
    %2413 = vmatmul.mubr.f32.gmra.mrb[0].mxu0 %v2346
    %v2414 = vpop.f32.mrb[0].mxu0
    %v2415 = vadd.f32 %v2344, %v2414
    %v2416 = vpop.f32.mrb[0].mxu0
    %2417 = vdwg.mxu0
    %2418 = vst [vmem:[#allocation2] sm:$0x3] %v2415
    // Predicated region
    $region10: #{_lambda_.1} parent=1 // pred_check
      _
    $region11: #{_lambda_.1} parent=1 // pred_check_branch
      %2420 = sbr.rel (0) target = $region13
    $region12: #{_lambda_.1} parent=1 // pred_region
      %s2422 = ssub.s32 32, 32
      %2423 = vsyncadd [#allocation3], %s2422
      %s2425 = sshll.u32 [#allocation2], 4
      %s2426 = int_to_ptr.vmem [resolvable:$true] %s2425
      %2428 = dma.vmem_to_hbm [thread:$0]  %s2426, 32, %s2, [#allocation3]
    $region13: #{_lambda_.1} parent=1 // pred_fallthru
      _
    // Predicated region
    $region14: #{_lambda_.1} parent=1 // pred_check
      _
    $region15: #{_lambda_.1} parent=1 // pred_check_branch
      %2430 = sbr.rel (0) target = $region17
    $region16: #{_lambda_.1} parent=1 // pred_region
      %2431 = dma.done [#allocation3], 32
    $region17: #{_lambda_.1} parent=1 // pred_fallthru
      _
    %2432 = vsyncpa [#allocation3], 1

</llo_original>
